<compile_context>
chip_gen: v7x
topology: tpu7x:2x2x1
jax: 0.10.0
libtpu: 0.0.40
codegen_flags: <defaults>
</compile_context>

<pallas_src>
import functools

import jax
import jax.numpy as jnp
from jax.experimental import pallas as pl
from jax.experimental.pallas import tpu as pltpu


# ----------------------------------------------------------------------------
# Kernel 1: fused ndnet tail + classification head (single launch, grid=(1,))
#   feat_ = f1 + f2                              (B, D, N)
#   feat  = (W_nd @ feat_) * scale + shift       (1x1 conv + folded BN, no relu)
#   pooled[:, b] = max_n feat[b, :, n]           (D, B)
#   h1 = relu(W1 @ pooled + b1)                  (512, B)   bf16 MXU, f32 acc
#   h2 = relu(W2 @ h1 + b2)                      (256, B)
#   logits = W3 @ h2 + b3                        (K,   B)
#   out = softmax over the class axis (rows)     (K,   B)   -> (B, K, 1) outside
# ----------------------------------------------------------------------------
def _fused_nd_head_kernel(f1_ref, f2_ref, wnd_ref, nds_ref, ndb_ref,
                          w1_ref, b1_ref, w2_ref, b2_ref, w3_ref, b3_ref,
                          o_ref, *, batch):
    # 1x1 conv + folded BN on feat_ = f1 + f2, then max-pool over points,
    # batch by batch (B is tiny and static); collect pooled columns (D, B).
    cols = []
    for b in range(batch):
        xb = f1_ref[b] + f2_ref[b]                                         # (D, N)
        yb = jnp.dot(wnd_ref[...], xb, preferred_element_type=jnp.float32)  # (D, N)
        yb = yb * nds_ref[...] + ndb_ref[...]                              # BN fold
        cols.append(jnp.max(yb, axis=-1, keepdims=True))                   # (D, 1)
    pooled = cols[0] if batch == 1 else jnp.concatenate(cols, axis=-1)     # (D, B)

    # 3-layer MLP head, run once with B activation columns (bf16 MXU, f32 acc).
    h = jnp.dot(w1_ref[...], pooled.astype(w1_ref.dtype),
                preferred_element_type=jnp.float32) + b1_ref[...]
    h = jnp.maximum(h, 0.0)                                                # (512, B)
    h = jnp.dot(w2_ref[...], h.astype(w2_ref.dtype),
                preferred_element_type=jnp.float32) + b2_ref[...]
    h = jnp.maximum(h, 0.0)                                                # (256, B)
    logits = jnp.dot(w3_ref[...], h.astype(w3_ref.dtype),
                     preferred_element_type=jnp.float32) + b3_ref[...]     # (K, B)

    # Softmax over the class axis (rows), exact normalization in f32.
    m = jnp.max(logits, axis=0, keepdims=True)
    e = jnp.exp(logits - m)
    o_ref[...] = (e / jnp.sum(e, axis=0, keepdims=True)).astype(o_ref.dtype)


def fused_nd_head(feat1_coarse, feat2, nd_w, nd_b, nd_bn,
                  w1, b1, w2, b2, w3, b3, *, eps=1e-5):
    """Fused: feat_=f1+f2 -> bn1(conv1(.)) -> maxpool -> MLP head -> softmax.

    feat1_coarse, feat2: (B, D, N).  Returns probabilities (B, K, 1)."""
    B, D, N = feat1_coarse.shape
    H1 = w1.shape[0]
    H2 = w2.shape[0]
    K = w3.shape[0]

    # Fold conv bias + eval-mode BN into per-channel scale/shift.
    gamma, beta, mean, var = nd_bn
    s = gamma / jnp.sqrt(var + eps)
    nd_scale = s.reshape(D, 1).astype(jnp.float32)
    nd_shift = ((nd_b - mean) * s + beta).reshape(D, 1).astype(jnp.float32)

    kernel = functools.partial(_fused_nd_head_kernel, batch=B)
    out_kb = pl.pallas_call(
        kernel,
        out_shape=jax.ShapeDtypeStruct((K, B), feat1_coarse.dtype),
        grid_spec=pltpu.PrefetchScalarGridSpec(
            num_scalar_prefetch=0,
            grid=(1,),
            in_specs=[
                pl.BlockSpec((B, D, N), lambda i: (0, 0, 0)),   # feat1_coarse
                pl.BlockSpec((B, D, N), lambda i: (0, 0, 0)),   # feat2
                pl.BlockSpec((D, D),    lambda i: (0, 0)),      # nd conv weight (f32)
                pl.BlockSpec((D, 1),    lambda i: (0, 0)),      # folded BN scale
                pl.BlockSpec((D, 1),    lambda i: (0, 0)),      # folded BN shift
                pl.BlockSpec((H1, D),   lambda i: (0, 0)),      # head W1 (bf16)
                pl.BlockSpec((H1, 1),   lambda i: (0, 0)),      # head b1
                pl.BlockSpec((H2, H1),  lambda i: (0, 0)),      # head W2 (bf16)
                pl.BlockSpec((H2, 1),   lambda i: (0, 0)),      # head b2
                pl.BlockSpec((K, H2),   lambda i: (0, 0)),      # head W3 (bf16)
                pl.BlockSpec((K, 1),    lambda i: (0, 0)),      # head b3
            ],
            out_specs=pl.BlockSpec((K, B), lambda i: (0, 0)),
        ),
        compiler_params=pltpu.CompilerParams(
            dimension_semantics=("arbitrary",)),   # single step: no megacore split
    )(feat1_coarse, feat2, nd_w.astype(jnp.float32),
      nd_scale, nd_shift,
      w1.astype(jnp.bfloat16), b1.reshape(H1, 1).astype(jnp.float32),
      w2.astype(jnp.bfloat16), b2.reshape(H2, 1).astype(jnp.float32),
      w3.astype(jnp.bfloat16), b3.reshape(K, 1).astype(jnp.float32))

    # (K, B) -> (B, K, 1) to match torch.softmax(conv3(x), dim=1).  Tiny reshape.
    return jnp.transpose(out_kb, (1, 0))[:, :, None]


# ----------------------------------------------------------------------------
# Kernel 2: ResidualConnection — 1x1 conv over the *points* axis + BN + ReLU,
# with NO HBM transposes (contracts along the points axis in-kernel).
#   x: (B, feature_dim, in_points) -> (B, feature_dim, out_points)
#   y[b, f, o] = relu( (sum_i x[b, f, i] * W[o, i]) * scale[o] + shift[o] )
# ----------------------------------------------------------------------------
def _residual_kernel(x_ref, wt_ref, scale_ref, shift_ref, o_ref, *, batch):
    for b in range(batch):
        y = jnp.dot(x_ref[b], wt_ref[...], preferred_element_type=jnp.float32)  # (D, Pout)
        y = y * scale_ref[...] + shift_ref[...]        # BN over the out_points axis
        o_ref[b] = jnp.maximum(y, 0.0).astype(o_ref.dtype)


def residual_connection(x, w, conv_bias, bn_params, *, eps=1e-5):
    """ResidualConnection.forward.  x: (B, D, in_points) -> (B, D, out_points)."""
    B, D, Pin = x.shape
    Pout = w.shape[0]
    gamma, beta, mean, var = bn_params
    s = gamma / jnp.sqrt(var + eps)
    scale = s.reshape(1, Pout).astype(jnp.float32)
    shift = ((conv_bias - mean) * s + beta).reshape(1, Pout).astype(jnp.float32)
    wt = jnp.transpose(w, (1, 0)).astype(jnp.float32)   # (Pin, Pout); tiny, one-off

    kernel = functools.partial(_residual_kernel, batch=B)
    return pl.pallas_call(
        kernel,
        out_shape=jax.ShapeDtypeStruct((B, D, Pout), x.dtype),
        grid_spec=pltpu.PrefetchScalarGridSpec(
            num_scalar_prefetch=0,
            grid=(1,),
            in_specs=[
                pl.BlockSpec((B, D, Pin), lambda i: (0, 0, 0)),
                pl.BlockSpec((Pin, Pout), lambda i: (0, 0)),
                pl.BlockSpec((1, Pout),   lambda i: (0, 0)),
                pl.BlockSpec((1, Pout),   lambda i: (0, 0)),
            ],
            out_specs=pl.BlockSpec((B, D, Pout), lambda i: (0, 0, 0)),
        ),
        compiler_params=pltpu.CompilerParams(dimension_semantics=("arbitrary",)),
    )(x, wt, scale, shift)


# ----------------------------------------------------------------------------
# Full forward pass (defined pieces of ndnet + ndnetClassification)
# ----------------------------------------------------------------------------
@jax.jit
def ndnet_classification_forward(feat1, feat1_coarse, feat2, down1, downcov1, params):
    # TODO(synk): NDTNet / NDT_Sampler are undefined in the reference, so the
    # residual(feat1) -> concat(down1, downcov1, feat1_) -> ndtnet2 branch has
    # no evaluable consumer; `feat1_coarse` stands in for ndtnet2's output and
    # the residual path is omitted here (it would be dead compute).  The
    # ResidualConnection Pallas kernel is provided above and verified in
    # __main__.
    del feat1, down1, downcov1

    # feat_ = ndtnet2(down1, downcov1_cat) + ndtnet2(points2, covariances2)
    # feat  = self.bn1(self.conv1(feat_))
    # x = max(feat, 2); relu(conv1); relu(conv2); conv3; softmax(dim=1)
    # — all fused into one pallas_call (including the feat1_coarse + feat2 add).
    return fused_nd_head(feat1_coarse, feat2,
                         params["nd_w"], params["nd_b"], params["nd_bn"],
                         params["w1"], params["b1"],
                         params["w2"], params["b2"],
                         params["w3"], params["b3"])


# ----------------------------------------------------------------------------
if __name__ == "__main__":
    B = 2
    point_dim = 3
    cov_dim = 6
    feature_dim = 32
    fine_res = 16
    coarse_res = 8
    num_classes = 16
    hidden1, hidden2 = 512, 256   # hard-coded in the PyTorch module

    key = jax.random.PRNGKey(0)
    keys = jax.random.split(key, 20)

    # Inputs the PyTorch module would receive.
    points2 = jax.random.normal(keys[2], (B, coarse_res, point_dim), jnp.float32)
    covariances2 = jax.random.normal(keys[3], (B, coarse_res, cov_dim), jnp.float32)

    # TODO(synk): NDTNet / NDT_Sampler are undefined in the reference; substitute
    # their outputs with deterministic placeholders of the correct shapes.
    feat1 = jax.random.normal(keys[4], (B, feature_dim, fine_res), jnp.float32)
    feat1_coarse = jax.random.normal(keys[5], (B, feature_dim, coarse_res), jnp.float32)
    feat2 = jax.random.normal(keys[6], (B, feature_dim, coarse_res), jnp.float32)
    down1 = jnp.transpose(points2, (0, 2, 1))          # (B, point_dim, coarse_res)
    downcov1 = jnp.transpose(covariances2, (0, 2, 1))  # (B, cov_dim,  coarse_res)

    # Deterministic parameter init (shapes from the module __init__).
    def winit(k, shape):
        return (0.05 * jax.random.normal(k, shape, jnp.float32)).astype(jnp.float32)

    def bn_default(c):
        return (jnp.ones((c,), jnp.float32), jnp.zeros((c,), jnp.float32),
                jnp.zeros((c,), jnp.float32), jnp.ones((c,), jnp.float32))

    params = {
        # ResidualConnection: Conv1d(fine_res, coarse_res, 1) + BN(coarse_res)
        "res_w": winit(keys[7], (coarse_res, fine_res)),
        "res_b": winit(keys[8], (coarse_res,)),
        "res_bn": bn_default(coarse_res),
        # ndnet: Conv1d(feature_dim, feature_dim, 1) + BN(feature_dim)
        "nd_w": winit(keys[9], (feature_dim, feature_dim)),
        "nd_b": winit(keys[10], (feature_dim,)),
        "nd_bn": bn_default(feature_dim),
        # Head: Conv1d(D,512,1), Conv1d(512,256,1), Conv1d(256,K,1).
        # Weights are stored in bf16 so the (only) real DMA volume is halved;
        # biases / BN / elementwise math stay f32 (v5e-safe).
        "w1": winit(keys[11], (hidden1, feature_dim)).astype(jnp.bfloat16),
        "b1": winit(keys[12], (hidden1,)),
        "w2": winit(keys[13], (hidden2, hidden1)).astype(jnp.bfloat16),
        "b2": winit(keys[14], (hidden2,)),
        "w3": winit(keys[15], (num_classes, hidden2)).astype(jnp.bfloat16),
        "b3": winit(keys[16], (num_classes,)),
    }

    # --- run the fused forward pass (single pallas_call, jitted) ---
    out = ndnet_classification_forward(feat1, feat1_coarse, feat2, down1, downcov1,
                                       params)
    out = jax.block_until_ready(out)

    assert out.shape == (B, num_classes, 1), out.shape
    sums = jnp.sum(out[:, :, 0], axis=1)
    assert bool(jnp.all(jnp.abs(sums - 1.0) < 1e-4)), sums
    assert bool(jnp.all(jnp.isfinite(out)))

    # Pure-JAX reference for the fused kernel.
    def head_reference(f1c, f2, p, eps=1e-5):
        gamma, beta, mean, var = p["nd_bn"]
        s = gamma / jnp.sqrt(var + eps)
        with jax.default_matmul_precision("highest"):
            x = f1c + f2                                               # (B, D, N)
            y = jnp.einsum("od,bdn->bon", p["nd_w"], x)
            y = y * s[None, :, None] + ((p["nd_b"] - mean) * s + beta)[None, :, None]
            pooled = jnp.max(y, axis=-1)                               # (B, D)
            w1 = p["w1"].astype(jnp.float32)
            w2 = p["w2"].astype(jnp.float32)
            w3 = p["w3"].astype(jnp.float32)
            h1 = jnp.maximum(pooled @ w1.T + p["b1"][None, :], 0.0)
            h2 = jnp.maximum(h1 @ w2.T + p["b2"][None, :], 0.0)
            logits = h2 @ w3.T + p["b3"][None, :]
        return jax.nn.softmax(logits, axis=-1)[:, :, None]

    ref = head_reference(feat1_coarse, feat2, params)
    assert bool(jnp.allclose(out, ref, atol=5e-3, rtol=5e-3)), (out[:, :, 0], ref[:, :, 0])

    # --- exercise the ResidualConnection kernel standalone (its consumer,
    #     ndtnet2, is undefined so it is not part of the jitted forward) ---
    res = residual_connection(feat1, params["res_w"], params["res_b"],
                              params["res_bn"])
    res = jax.block_until_ready(res)
    assert res.shape == (B, feature_dim, coarse_res), res.shape
    gamma, beta, mean, var = params["res_bn"]
    s = gamma / jnp.sqrt(var + 1e-5)
    with jax.default_matmul_precision("highest"):
        ref_res = jnp.maximum(
            jnp.einsum("bfi,oi->bfo", feat1, params["res_w"]) * s[None, None, :]
            + ((params["res_b"] - mean) * s + beta)[None, None, :], 0.0)
    assert bool(jnp.allclose(res, ref_res, atol=1e-3, rtol=1e-3))
    assert bool(jnp.all(jnp.isfinite(res)))

    print("KERNEL_OK")
</pallas_src>

<mosaic_0001>
module attributes {stable_mosaic.version = 11 : i64} {
  func.func @_fused_nd_head_kernel(%arg0: i32, %arg1: memref<2x32x8xf32, #tpu.memory_space<vmem>>, %arg2: memref<2x32x8xf32, #tpu.memory_space<vmem>>, %arg3: memref<32x32xf32, #tpu.memory_space<vmem>>, %arg4: memref<32x1xf32, #tpu.memory_space<vmem>>, %arg5: memref<32x1xf32, #tpu.memory_space<vmem>>, %arg6: memref<512x32xbf16, #tpu.memory_space<vmem>>, %arg7: memref<512x1xf32, #tpu.memory_space<vmem>>, %arg8: memref<256x512xbf16, #tpu.memory_space<vmem>>, %arg9: memref<256x1xf32, #tpu.memory_space<vmem>>, %arg10: memref<16x256xbf16, #tpu.memory_space<vmem>>, %arg11: memref<16x1xf32, #tpu.memory_space<vmem>>, %arg12: memref<16x2xf32, #tpu.memory_space<vmem>>) attributes {dimension_semantics = [#tpu.dimension_semantics<arbitrary>], iteration_bounds = array<i64: 1>, scalar_prefetch = 0 : i64, scratch_operands = 0 : i64, tpu.core_type = #tpu.core_type<tc>, window_params = [{pipeline_mode = #tpu.pipeline_mode<synchronous>, transform_indices = @transform_0, window_bounds = array<i64: 2, 32, 8>}, {pipeline_mode = #tpu.pipeline_mode<synchronous>, transform_indices = @transform_1, window_bounds = array<i64: 2, 32, 8>}, {pipeline_mode = #tpu.pipeline_mode<synchronous>, transform_indices = @transform_2, window_bounds = array<i64: 32, 32>}, {pipeline_mode = #tpu.pipeline_mode<synchronous>, transform_indices = @transform_3, window_bounds = array<i64: 32, 1>}, {pipeline_mode = #tpu.pipeline_mode<synchronous>, transform_indices = @transform_4, window_bounds = array<i64: 32, 1>}, {pipeline_mode = #tpu.pipeline_mode<synchronous>, transform_indices = @transform_5, window_bounds = array<i64: 512, 32>}, {pipeline_mode = #tpu.pipeline_mode<synchronous>, transform_indices = @transform_6, window_bounds = array<i64: 512, 1>}, {pipeline_mode = #tpu.pipeline_mode<synchronous>, transform_indices = @transform_7, window_bounds = array<i64: 256, 512>}, {pipeline_mode = #tpu.pipeline_mode<synchronous>, transform_indices = @transform_8, window_bounds = array<i64: 256, 1>}, {pipeline_mode = #tpu.pipeline_mode<synchronous>, transform_indices = @transform_9, window_bounds = array<i64: 16, 256>}, {pipeline_mode = #tpu.pipeline_mode<synchronous>, transform_indices = @transform_10, window_bounds = array<i64: 16, 1>}, {pipeline_mode = #tpu.pipeline_mode<synchronous>, transform_indices = @transform_11, window_bounds = array<i64: 16, 2>}]} {
    %c0 = arith.constant 0 : index
    %c0_0 = arith.constant 0 : index
    %c0_1 = arith.constant 0 : index
    %0 = vector.load %arg1[%c0, %c0_0, %c0_1] : memref<2x32x8xf32, #tpu.memory_space<vmem>>, vector<1x32x8xf32>
    %1 = vector.shape_cast %0 : vector<1x32x8xf32> to vector<32x8xf32>
    %c0_2 = arith.constant 0 : index
    %c0_3 = arith.constant 0 : index
    %c0_4 = arith.constant 0 : index
    %2 = vector.load %arg2[%c0_2, %c0_3, %c0_4] : memref<2x32x8xf32, #tpu.memory_space<vmem>>, vector<1x32x8xf32>
    %3 = vector.shape_cast %2 : vector<1x32x8xf32> to vector<32x8xf32>
    %4 = arith.addf %1, %3 : vector<32x8xf32>
    %c0_5 = arith.constant 0 : index
    %c0_6 = arith.constant 0 : index
    %5 = vector.load %arg3[%c0_5, %c0_6] : memref<32x32xf32, #tpu.memory_space<vmem>>, vector<32x32xf32>
    %cst = arith.constant dense<0.000000e+00> : vector<32x8xf32>
    %6 = tpu.matmul %5, %4, %cst {dimension_numbers = #tpu.dot_dimension_numbers<[1], [0], [0], [1], [0, 0, 1, 1], [], []>} : vector<32x32xf32>, vector<32x8xf32>, vector<32x8xf32> -> vector<32x8xf32>
    %c0_7 = arith.constant 0 : index
    %c0_8 = arith.constant 0 : index
    %7 = vector.load %arg4[%c0_7, %c0_8] : memref<32x1xf32, #tpu.memory_space<vmem>>, vector<32x1xf32>
    %8 = vector.broadcast %7 : vector<32x1xf32> to vector<32x8xf32>
    %9 = arith.mulf %6, %8 : vector<32x8xf32>
    %c0_9 = arith.constant 0 : index
    %c0_10 = arith.constant 0 : index
    %10 = vector.load %arg5[%c0_9, %c0_10] : memref<32x1xf32, #tpu.memory_space<vmem>>, vector<32x1xf32>
    %11 = vector.broadcast %10 : vector<32x1xf32> to vector<32x8xf32>
    %12 = arith.addf %9, %11 : vector<32x8xf32>
    %cst_11 = arith.constant dense<0xFF800000> : vector<32xf32>
    %13 = vector.multi_reduction <maximumf>, %12, %cst_11 [1] : vector<32x8xf32> to vector<32xf32>
    %14 = vector.shape_cast %13 : vector<32xf32> to vector<32x1xf32>
    %c1 = arith.constant 1 : index
    %c0_12 = arith.constant 0 : index
    %c0_13 = arith.constant 0 : index
    %15 = vector.load %arg1[%c1, %c0_12, %c0_13] : memref<2x32x8xf32, #tpu.memory_space<vmem>>, vector<1x32x8xf32>
    %16 = vector.shape_cast %15 : vector<1x32x8xf32> to vector<32x8xf32>
    %c1_14 = arith.constant 1 : index
    %c0_15 = arith.constant 0 : index
    %c0_16 = arith.constant 0 : index
    %17 = vector.load %arg2[%c1_14, %c0_15, %c0_16] : memref<2x32x8xf32, #tpu.memory_space<vmem>>, vector<1x32x8xf32>
    %18 = vector.shape_cast %17 : vector<1x32x8xf32> to vector<32x8xf32>
    %19 = arith.addf %16, %18 : vector<32x8xf32>
    %c0_17 = arith.constant 0 : index
    %c0_18 = arith.constant 0 : index
    %20 = vector.load %arg3[%c0_17, %c0_18] : memref<32x32xf32, #tpu.memory_space<vmem>>, vector<32x32xf32>
    %cst_19 = arith.constant dense<0.000000e+00> : vector<32x8xf32>
    %21 = tpu.matmul %20, %19, %cst_19 {dimension_numbers = #tpu.dot_dimension_numbers<[1], [0], [0], [1], [0, 0, 1, 1], [], []>} : vector<32x32xf32>, vector<32x8xf32>, vector<32x8xf32> -> vector<32x8xf32>
    %c0_20 = arith.constant 0 : index
    %c0_21 = arith.constant 0 : index
    %22 = vector.load %arg4[%c0_20, %c0_21] : memref<32x1xf32, #tpu.memory_space<vmem>>, vector<32x1xf32>
    %23 = vector.broadcast %22 : vector<32x1xf32> to vector<32x8xf32>
    %24 = arith.mulf %21, %23 : vector<32x8xf32>
    %c0_22 = arith.constant 0 : index
    %c0_23 = arith.constant 0 : index
    %25 = vector.load %arg5[%c0_22, %c0_23] : memref<32x1xf32, #tpu.memory_space<vmem>>, vector<32x1xf32>
    %26 = vector.broadcast %25 : vector<32x1xf32> to vector<32x8xf32>
    %27 = arith.addf %24, %26 : vector<32x8xf32>
    %cst_24 = arith.constant dense<0xFF800000> : vector<32xf32>
    %28 = vector.multi_reduction <maximumf>, %27, %cst_24 [1] : vector<32x8xf32> to vector<32xf32>
    %29 = vector.shape_cast %28 : vector<32xf32> to vector<32x1xf32>
    %30 = tpu.concatenate %14, %29 in 1 : vector<32x1xf32>, vector<32x1xf32> -> vector<32x2xf32>
    %c0_25 = arith.constant 0 : index
    %c0_26 = arith.constant 0 : index
    %31 = vector.load %arg6[%c0_25, %c0_26] : memref<512x32xbf16, #tpu.memory_space<vmem>>, vector<512x32xbf16>
    %32 = arith.truncf %30 : vector<32x2xf32> to vector<32x2xbf16>
    %cst_27 = arith.constant dense<0.000000e+00> : vector<512x2xf32>
    %33 = tpu.matmul %31, %32, %cst_27 {dimension_numbers = #tpu.dot_dimension_numbers<[1], [0], [0], [1], [0, 0, 1, 1], [], []>} : vector<512x32xbf16>, vector<32x2xbf16>, vector<512x2xf32> -> vector<512x2xf32>
    %c0_28 = arith.constant 0 : index
    %c0_29 = arith.constant 0 : index
    %34 = vector.load %arg7[%c0_28, %c0_29] : memref<512x1xf32, #tpu.memory_space<vmem>>, vector<512x1xf32>
    %35 = vector.broadcast %34 : vector<512x1xf32> to vector<512x2xf32>
    %36 = arith.addf %33, %35 : vector<512x2xf32>
    %cst_30 = arith.constant 0.000000e+00 : f32
    %37 = vector.broadcast %cst_30 : f32 to vector<512x2xf32>
    %38 = arith.maximumf %36, %37 : vector<512x2xf32>
    %c0_31 = arith.constant 0 : index
    %c0_32 = arith.constant 0 : index
    %39 = vector.load %arg8[%c0_31, %c0_32] : memref<256x512xbf16, #tpu.memory_space<vmem>>, vector<256x512xbf16>
    %40 = arith.truncf %38 : vector<512x2xf32> to vector<512x2xbf16>
    %cst_33 = arith.constant dense<0.000000e+00> : vector<256x2xf32>
    %41 = tpu.matmul %39, %40, %cst_33 {dimension_numbers = #tpu.dot_dimension_numbers<[1], [0], [0], [1], [0, 0, 1, 1], [], []>} : vector<256x512xbf16>, vector<512x2xbf16>, vector<256x2xf32> -> vector<256x2xf32>
    %c0_34 = arith.constant 0 : index
    %c0_35 = arith.constant 0 : index
    %42 = vector.load %arg9[%c0_34, %c0_35] : memref<256x1xf32, #tpu.memory_space<vmem>>, vector<256x1xf32>
    %43 = vector.broadcast %42 : vector<256x1xf32> to vector<256x2xf32>
    %44 = arith.addf %41, %43 : vector<256x2xf32>
    %cst_36 = arith.constant 0.000000e+00 : f32
    %45 = vector.broadcast %cst_36 : f32 to vector<256x2xf32>
    %46 = arith.maximumf %44, %45 : vector<256x2xf32>
    %c0_37 = arith.constant 0 : index
    %c0_38 = arith.constant 0 : index
    %47 = vector.load %arg10[%c0_37, %c0_38] : memref<16x256xbf16, #tpu.memory_space<vmem>>, vector<16x256xbf16>
    %48 = arith.truncf %46 : vector<256x2xf32> to vector<256x2xbf16>
    %cst_39 = arith.constant dense<0.000000e+00> : vector<16x2xf32>
    %49 = tpu.matmul %47, %48, %cst_39 {dimension_numbers = #tpu.dot_dimension_numbers<[1], [0], [0], [1], [0, 0, 1, 1], [], []>} : vector<16x256xbf16>, vector<256x2xbf16>, vector<16x2xf32> -> vector<16x2xf32>
    %c0_40 = arith.constant 0 : index
    %c0_41 = arith.constant 0 : index
    %50 = vector.load %arg11[%c0_40, %c0_41] : memref<16x1xf32, #tpu.memory_space<vmem>>, vector<16x1xf32>
    %51 = vector.broadcast %50 : vector<16x1xf32> to vector<16x2xf32>
    %52 = arith.addf %49, %51 : vector<16x2xf32>
    %cst_42 = arith.constant dense<0xFF800000> : vector<2xf32>
    %53 = vector.multi_reduction <maximumf>, %52, %cst_42 [0] : vector<16x2xf32> to vector<2xf32>
    %54 = vector.shape_cast %53 : vector<2xf32> to vector<1x2xf32>
    %55 = vector.broadcast %54 : vector<1x2xf32> to vector<16x2xf32>
    %56 = arith.subf %52, %55 : vector<16x2xf32>
    %57 = math.exp %56 : vector<16x2xf32>
    %cst_43 = arith.constant dense<0.000000e+00> : vector<2xf32>
    %58 = vector.multi_reduction <add>, %57, %cst_43 [0] : vector<16x2xf32> to vector<2xf32>
    %59 = vector.shape_cast %58 : vector<2xf32> to vector<1x2xf32>
    %60 = vector.broadcast %59 : vector<1x2xf32> to vector<16x2xf32>
    %61 = arith.divf %57, %60 : vector<16x2xf32>
    %c0_44 = arith.constant 0 : index
    %c0_45 = arith.constant 0 : index
    %62 = vector.load %arg12[%c0_44, %c0_45] : memref<16x2xf32, #tpu.memory_space<vmem>>, vector<16x2xf32>
    tpu.vector_store %arg12[%c0_44, %c0_45], %61 {strides = array<i32>} : memref<16x2xf32, #tpu.memory_space<vmem>>, vector<16x2xf32>,
    return
  }
  func.func @transform_0(%arg0: i32) -> (i32, i32, i32) {
    %c0_i32 = arith.constant 0 : i32
    %c0_i32_0 = arith.constant 0 : i32
    %c0_i32_1 = arith.constant 0 : i32
    %c0_i32_2 = arith.constant 0 : i32
    return %c0_i32, %c0_i32_0, %c0_i32_1 : i32, i32, i32
  }
  func.func @transform_1(%arg0: i32) -> (i32, i32, i32) {
    %c0_i32 = arith.constant 0 : i32
    %c0_i32_0 = arith.constant 0 : i32
    %c0_i32_1 = arith.constant 0 : i32
    %c0_i32_2 = arith.constant 0 : i32
    return %c0_i32, %c0_i32_0, %c0_i32_1 : i32, i32, i32
  }
  func.func @transform_2(%arg0: i32) -> (i32, i32) {
    %c0_i32 = arith.constant 0 : i32
    %c0_i32_0 = arith.constant 0 : i32
    %c0_i32_1 = arith.constant 0 : i32
    return %c0_i32, %c0_i32_0 : i32, i32
  }
  func.func @transform_3(%arg0: i32) -> (i32, i32) {
    %c0_i32 = arith.constant 0 : i32
    %c0_i32_0 = arith.constant 0 : i32
    %c0_i32_1 = arith.constant 0 : i32
    return %c0_i32, %c0_i32_0 : i32, i32
  }
  func.func @transform_4(%arg0: i32) -> (i32, i32) {
    %c0_i32 = arith.constant 0 : i32
    %c0_i32_0 = arith.constant 0 : i32
    %c0_i32_1 = arith.constant 0 : i32
    return %c0_i32, %c0_i32_0 : i32, i32
  }
  func.func @transform_5(%arg0: i32) -> (i32, i32) {
    %c0_i32 = arith.constant 0 : i32
    %c0_i32_0 = arith.constant 0 : i32
    %c0_i32_1 = arith.constant 0 : i32
    return %c0_i32, %c0_i32_0 : i32, i32
  }
  func.func @transform_6(%arg0: i32) -> (i32, i32) {
    %c0_i32 = arith.constant 0 : i32
    %c0_i32_0 = arith.constant 0 : i32
    %c0_i32_1 = arith.constant 0 : i32
    return %c0_i32, %c0_i32_0 : i32, i32
  }
  func.func @transform_7(%arg0: i32) -> (i32, i32) {
    %c0_i32 = arith.constant 0 : i32
    %c0_i32_0 = arith.constant 0 : i32
    %c0_i32_1 = arith.constant 0 : i32
    return %c0_i32, %c0_i32_0 : i32, i32
  }
  func.func @transform_8(%arg0: i32) -> (i32, i32) {
    %c0_i32 = arith.constant 0 : i32
    %c0_i32_0 = arith.constant 0 : i32
    %c0_i32_1 = arith.constant 0 : i32
    return %c0_i32, %c0_i32_0 : i32, i32
  }
  func.func @transform_9(%arg0: i32) -> (i32, i32) {
    %c0_i32 = arith.constant 0 : i32
    %c0_i32_0 = arith.constant 0 : i32
    %c0_i32_1 = arith.constant 0 : i32
    return %c0_i32, %c0_i32_0 : i32, i32
  }
  func.func @transform_10(%arg0: i32) -> (i32, i32) {
    %c0_i32 = arith.constant 0 : i32
    %c0_i32_0 = arith.constant 0 : i32
    %c0_i32_1 = arith.constant 0 : i32
    return %c0_i32, %c0_i32_0 : i32, i32
  }
  func.func @transform_11(%arg0: i32) -> (i32, i32) {
    %c0_i32 = arith.constant 0 : i32
    %c0_i32_0 = arith.constant 0 : i32
    %c0_i32_1 = arith.constant 0 : i32
    return %c0_i32, %c0_i32_0 : i32, i32
  }
}

</mosaic_0001>

<llo_original>
// kernel: ndnet_classification_forward.1
$region0: #{ndnet_classification_forward.1}
  #allocation0 [shape = 'u32[]', space=smem, size = 0x4, offset = 0x4, fixed_abs, tag = 'smem constant byte address 0x4 - core index']
  #allocation1 [shape = 'u32[144,128]{1,0:T(1,128)}', space=vmem, size = 0x12000, scoped, tag = 'internal scratch']
  %s0 = inlined_call_operand.vmem [shape: f32[2,32,8], index: 0, kind: input, shape index: {}]
  %s1 = inlined_call_operand.vmem [shape: f32[2,32,8], index: 1, kind: input, shape index: {}]
  %s2 = inlined_call_operand.vmem [shape: f32[32,32], index: 2, kind: input, shape index: {}]
  %s3 = inlined_call_operand.vmem [shape: f32[32,1], index: 3, kind: input, shape index: {}]
  %s4 = inlined_call_operand.vmem [shape: f32[32,1], index: 4, kind: input, shape index: {}]
  %s5 = inlined_call_operand.vmem [shape: bf16[512,32], index: 5, kind: input, shape index: {}]
  %s6 = inlined_call_operand.vmem [shape: f32[512,1], index: 6, kind: input, shape index: {}]
  %s7 = inlined_call_operand.vmem [shape: bf16[256,512], index: 7, kind: input, shape index: {}]
  %s8 = inlined_call_operand.vmem [shape: f32[256,1], index: 8, kind: input, shape index: {}]
  %s9 = inlined_call_operand.vmem [shape: bf16[16,256], index: 9, kind: input, shape index: {}]
  %s10 = inlined_call_operand.vmem [shape: f32[16,1], index: 10, kind: input, shape index: {}]
  %s11 = inlined_call_operand.vmem [shape: f32[16,2], index: 11, kind: output, shape index: {}]
  %s12 = sld [smem:[#allocation0]]
  $region54: #{ndnet_classification_forward.1} parent=0
    _
  %s14 = ssub.s32 1, %s12
  %s15 = scalar_select 0, %s14, %s12
  // Predicated region
  $region2: #{ndnet_classification_forward.1} parent=0 // pred_check
    _
  $region3: #{ndnet_classification_forward.1} parent=0 // pred_check_branch
    %17 = sbr.rel (0) target = $region5
  $region4: #{ndnet_classification_forward.1} parent=0 // pred_region
    _
  $region5: #{ndnet_classification_forward.1} parent=0 // pred_fallthru
    _
  // Predicated region
  $region6: #{ndnet_classification_forward.1} parent=0 // pred_check
    _
  $region7: #{ndnet_classification_forward.1} parent=0 // pred_check_branch
    %19 = sbr.rel (0) target = $region9
  $region8: #{ndnet_classification_forward.1} parent=0 // pred_region
    _
  $region9: #{ndnet_classification_forward.1} parent=0 // pred_fallthru
    _
  // Predicated region
  $region10: #{ndnet_classification_forward.1} parent=0 // pred_check
    _
  $region11: #{ndnet_classification_forward.1} parent=0 // pred_check_branch
    %21 = sbr.rel (0) target = $region13
  $region12: #{ndnet_classification_forward.1} parent=0 // pred_region
    _
  $region13: #{ndnet_classification_forward.1} parent=0 // pred_fallthru
    _
  // Predicated region
  $region14: #{ndnet_classification_forward.1} parent=0 // pred_check
    _
  $region15: #{ndnet_classification_forward.1} parent=0 // pred_check_branch
    %23 = sbr.rel (0) target = $region17
  $region16: #{ndnet_classification_forward.1} parent=0 // pred_region
    _
  $region17: #{ndnet_classification_forward.1} parent=0 // pred_fallthru
    _
  // Predicated region
  $region18: #{ndnet_classification_forward.1} parent=0 // pred_check
    _
  $region19: #{ndnet_classification_forward.1} parent=0 // pred_check_branch
    %25 = sbr.rel (0) target = $region21
  $region20: #{ndnet_classification_forward.1} parent=0 // pred_region
    _
  $region21: #{ndnet_classification_forward.1} parent=0 // pred_fallthru
    _
  // Predicated region
  $region22: #{ndnet_classification_forward.1} parent=0 // pred_check
    _
  $region23: #{ndnet_classification_forward.1} parent=0 // pred_check_branch
    %27 = sbr.rel (0) target = $region25
  $region24: #{ndnet_classification_forward.1} parent=0 // pred_region
    _
  $region25: #{ndnet_classification_forward.1} parent=0 // pred_fallthru
    _
  // Predicated region
  $region26: #{ndnet_classification_forward.1} parent=0 // pred_check
    _
  $region27: #{ndnet_classification_forward.1} parent=0 // pred_check_branch
    %29 = sbr.rel (0) target = $region29
  $region28: #{ndnet_classification_forward.1} parent=0 // pred_region
    _
  $region29: #{ndnet_classification_forward.1} parent=0 // pred_fallthru
    _
  // Predicated region
  $region30: #{ndnet_classification_forward.1} parent=0 // pred_check
    _
  $region31: #{ndnet_classification_forward.1} parent=0 // pred_check_branch
    %31 = sbr.rel (0) target = $region33
  $region32: #{ndnet_classification_forward.1} parent=0 // pred_region
    _
  $region33: #{ndnet_classification_forward.1} parent=0 // pred_fallthru
    _
  // Predicated region
  $region34: #{ndnet_classification_forward.1} parent=0 // pred_check
    _
  $region35: #{ndnet_classification_forward.1} parent=0 // pred_check_branch
    %33 = sbr.rel (0) target = $region37
  $region36: #{ndnet_classification_forward.1} parent=0 // pred_region
    _
  $region37: #{ndnet_classification_forward.1} parent=0 // pred_fallthru
    _
  // Predicated region
  $region38: #{ndnet_classification_forward.1} parent=0 // pred_check
    _
  $region39: #{ndnet_classification_forward.1} parent=0 // pred_check_branch
    %35 = sbr.rel (0) target = $region41
  $region40: #{ndnet_classification_forward.1} parent=0 // pred_region
    _
  $region41: #{ndnet_classification_forward.1} parent=0 // pred_fallthru
    _
  // Predicated region
  $region42: #{ndnet_classification_forward.1} parent=0 // pred_check
    _
  $region43: #{ndnet_classification_forward.1} parent=0 // pred_check_branch
    %37 = sbr.rel (0) target = $region45
  $region44: #{ndnet_classification_forward.1} parent=0 // pred_region
    _
  $region45: #{ndnet_classification_forward.1} parent=0 // pred_fallthru
    _
  %v39 = vld [vmem:[%s0] sm:$0xff]
  %v40 = vld [vmem:[%s0 + $0x8] sm:$0xff]
  %v41 = vld [vmem:[%s0 + $0x10] sm:$0xff]
  %v42 = vld [vmem:[%s0 + $0x18] sm:$0xff]
  %v43 = vld [vmem:[%s1] sm:$0xff]
  %v44 = vld [vmem:[%s1 + $0x8] sm:$0xff]
  %v45 = vld [vmem:[%s1 + $0x10] sm:$0xff]
  %v46 = vld [vmem:[%s1 + $0x18] sm:$0xff]
  %v47 = vadd.f32 %v39, %v43
  %v48 = vadd.f32 %v40, %v44
  %v49 = vadd.f32 %v41, %v45
  %v50 = vadd.f32 %v42, %v46
  %v51 = vld [vmem:[%s2] sm:$0xff]
  %v52 = vld [vmem:[%s2 + $0x8] sm:$0xff]
  %v53 = vld [vmem:[%s2 + $0x10] sm:$0xff]
  %v54 = vld [vmem:[%s2 + $0x18] sm:$0xff]
  %vm55 = vcmask 261120
  %v57 = vsel %vm55, %v51, 0
  %v60 = vsel %vm55, %v52, 0
  %v63 = vsel %vm55, %v53, 0
  %v66 = vsel %vm55, %v54, 0
  %68 = vmatprep.subr.mxu0 0.0
  %69 = vmatpush1.msra.mxu0 %v47
  %70 = vmatprep.subr.mxu0 0.0
  %71 = vmatpush1.msra.mxu0 %v48
  %72 = vmatprep.subr.mxu0 0.0
  %73 = vmatpush1.msra.mxu0 %v49
  %74 = vmatprep.subr.mxu0 0.0
  %75 = vmatpush1.msra.mxu0 %v50
  %76 = vmatprep.subr.mxu0 0.0
  %77 = vmatpush1.msra.mxu0 0.0
  %78 = vmatprep.subr.mxu0 0.0
  %79 = vmatpush1.msra.mxu0 0.0
  %80 = vmatprep.subr.mxu0 0.0
  %81 = vmatpush1.msra.mxu0 0.0
  %82 = vmatprep.subr.mxu0 0.0
  %83 = vmatpush1.msra.mxu0 0.0
  %84 = vmatprep.subr.mxu0 0.0
  %85 = vmatpush1.msra.mxu0 0.0
  %86 = vmatprep.subr.mxu0 0.0
  %87 = vmatpush1.msra.mxu0 0.0
  %88 = vmatprep.subr.mxu0 0.0
  %89 = vmatpush1.msra.mxu0 0.0
  %90 = vmatprep.subr.mxu0 0.0
  %91 = vmatpush1.msra.mxu0 0.0
  %92 = vmatprep.subr.mxu0 0.0
  %93 = vmatpush1.msra.mxu0 0.0
  %94 = vmatprep.subr.mxu0 0.0
  %95 = vmatpush1.msra.mxu0 0.0
  %96 = vmatprep.subr.mxu0 0.0
  %97 = vmatpush1.msra.mxu0 0.0
  %98 = vmatprep.subr.mxu0 0.0
  %99 = vmatpush1.msra.mxu0 0.0
  %100 = vmatprep.subr.mxu0 0.0
  %101 = vmatpush1.msra.mxu0 0.0
  %102 = vmatprep.subr.mxu0 0.0
  %103 = vmatpush1.msra.mxu0 0.0
  %104 = vmatprep.subr.mxu0 0.0
  %105 = vmatpush1.msra.mxu0 0.0
  %106 = vmatprep.subr.mxu0 0.0
  %107 = vmatpush1.msra.mxu0 0.0
  %108 = vmatprep.subr.mxu0 0.0
  %109 = vmatpush1.msra.mxu0 0.0
  %110 = vmatprep.subr.mxu0 0.0
  %111 = vmatpush1.msra.mxu0 0.0
  %112 = vmatprep.subr.mxu0 0.0
  %113 = vmatpush1.msra.mxu0 0.0
  %114 = vmatprep.subr.mxu0 0.0
  %115 = vmatpush1.msra.mxu0 0.0
  %116 = vmatprep.subr.mxu0 0.0
  %117 = vmatpush1.msra.mxu0 0.0
  %118 = vmatprep.subr.mxu0 0.0
  %119 = vmatpush1.msra.mxu0 0.0
  %120 = vmatprep.subr.mxu0 0.0
  %121 = vmatpush1.msra.mxu0 0.0
  %122 = vmatprep.subr.mxu0 0.0
  %123 = vmatpush1.msra.mxu0 0.0
  %124 = vmatprep.subr.mxu0 0.0
  %125 = vmatpush1.msra.mxu0 0.0
  %126 = vmatprep.subr.mxu0 0.0
  %127 = vmatpush1.msra.mxu0 0.0
  %128 = vmatprep.subr.mxu0 0.0
  %129 = vmatpush1.msra.mxu0 0.0
  %130 = vmatprep.subr.mxu0 0.0
  %131 = vmatpush1.msra.mxu0 0.0
  %132 = vmatprep.mubr.f32.mxu0 0.0
  %133 = vmatmul.mubr.f32.gmra.mrb[0].mxu0 %v57
  %v134 = vpop.f32.mrb[0].mxu0
  %v135 = vadd.f32 0.0, %v134
  %v136 = vpop.f32.mrb[0].mxu0
  %137 = vmatprep.mubr.f32.mxu0 0.0
  %138 = vmatmul.mubr.f32.gmra.mrb[0].mxu0 %v60
  %v139 = vpop.f32.mrb[0].mxu0
  %v140 = vadd.f32 0.0, %v139
  %v141 = vpop.f32.mrb[0].mxu0
  %142 = vmatprep.mubr.f32.mxu0 0.0
  %143 = vmatmul.mubr.f32.gmra.mrb[0].mxu0 %v63
  %v144 = vpop.f32.mrb[0].mxu0
  %v145 = vadd.f32 0.0, %v144
  %v146 = vpop.f32.mrb[0].mxu0
  %147 = vmatprep.mubr.f32.mxu0 0.0
  %148 = vmatmul.mubr.f32.gmra.mrb[0].mxu0 %v66
  %v149 = vpop.f32.mrb[0].mxu0
  %v150 = vadd.f32 0.0, %v149
  %v151 = vpop.f32.mrb[0].mxu0
  %152 = vdwg.mxu0
  %v153 = vld [vmem:[%s3] sm:$0xff]
  %v154 = vld [vmem:[%s3 + $0x8] sm:$0xff]
  %v155 = vld [vmem:[%s3 + $0x10] sm:$0xff]
  %v156 = vld [vmem:[%s3 + $0x18] sm:$0xff]
  %158 = vset.pattern.permute.xlu0 0
  %159 = vperm.xlu0 %158, %v153
  %v160 = vpop.permute.xlu0 %159
  %163 = vset.pattern.permute.xlu0 0
  %164 = vperm.xlu0 %163, %v154
  %v165 = vpop.permute.xlu0 %164
  %168 = vset.pattern.permute.xlu0 0
  %169 = vperm.xlu0 %168, %v155
  %v170 = vpop.permute.xlu0 %169
  %173 = vset.pattern.permute.xlu0 0
  %174 = vperm.xlu0 %173, %v156
  %v175 = vpop.permute.xlu0 %174
  %v177 = vmul.f32 %v135, %v160
  %v178 = vmul.f32 %v140, %v165
  %v179 = vmul.f32 %v145, %v170
  %v180 = vmul.f32 %v150, %v175
  %v181 = vld [vmem:[%s4] sm:$0xff]
  %v182 = vld [vmem:[%s4 + $0x8] sm:$0xff]
  %v183 = vld [vmem:[%s4 + $0x10] sm:$0xff]
  %v184 = vld [vmem:[%s4 + $0x18] sm:$0xff]
  %186 = vset.pattern.permute.xlu0 0
  %187 = vperm.xlu0 %186, %v181
  %v188 = vpop.permute.xlu0 %187
  %191 = vset.pattern.permute.xlu0 0
  %192 = vperm.xlu0 %191, %v182
  %v193 = vpop.permute.xlu0 %192
  %196 = vset.pattern.permute.xlu0 0
  %197 = vperm.xlu0 %196, %v183
  %v198 = vpop.permute.xlu0 %197
  %201 = vset.pattern.permute.xlu0 0
  %202 = vperm.xlu0 %201, %v184
  %v203 = vpop.permute.xlu0 %202
  %v205 = vadd.f32 %v177, %v188
  %v206 = vadd.f32 %v178, %v193
  %v207 = vadd.f32 %v179, %v198
  %v208 = vadd.f32 %v180, %v203
  %vm209 = vcmask 64512
  %v210 = vsel %vm209, %v205, -inf
  %211 = vmax.xlane.f32.xlu0 %v210
  %v212 = vpop.xlane.xlu0 %211
  %v213 = vsel %vm209, %v206, -inf
  %214 = vmax.xlane.f32.xlu0 %v213
  %v215 = vpop.xlane.xlu0 %214
  %v216 = vsel %vm209, %v207, -inf
  %217 = vmax.xlane.f32.xlu0 %v216
  %v218 = vpop.xlane.xlu0 %217
  %v219 = vsel %vm209, %v208, -inf
  %220 = vmax.xlane.f32.xlu0 %v219
  %v221 = vpop.xlane.xlu0 %220
  %s222 = scalar_lea.vmem %s0, 32
  %v223 = vld [vmem:[%s222] sm:$0xff]
  %v224 = vld [vmem:[%s222 + $0x8] sm:$0xff]
  %v225 = vld [vmem:[%s222 + $0x10] sm:$0xff]
  %v226 = vld [vmem:[%s222 + $0x18] sm:$0xff]
  %s227 = scalar_lea.vmem %s1, 32
  %v228 = vld [vmem:[%s227] sm:$0xff]
  %v229 = vld [vmem:[%s227 + $0x8] sm:$0xff]
  %v230 = vld [vmem:[%s227 + $0x10] sm:$0xff]
  %v231 = vld [vmem:[%s227 + $0x18] sm:$0xff]
  %v232 = vadd.f32 %v223, %v228
  %v233 = vadd.f32 %v224, %v229
  %v234 = vadd.f32 %v225, %v230
  %v235 = vadd.f32 %v226, %v231
  %236 = vmatprep.subr.mxu0 0.0
  %237 = vmatpush1.msra.mxu0 %v232
  %238 = vmatprep.subr.mxu0 0.0
  %239 = vmatpush1.msra.mxu0 %v233
  %240 = vmatprep.subr.mxu0 0.0
  %241 = vmatpush1.msra.mxu0 %v234
  %242 = vmatprep.subr.mxu0 0.0
  %243 = vmatpush1.msra.mxu0 %v235
  %244 = vmatprep.subr.mxu0 0.0
  %245 = vmatpush1.msra.mxu0 0.0
  %246 = vmatprep.subr.mxu0 0.0
  %247 = vmatpush1.msra.mxu0 0.0
  %248 = vmatprep.subr.mxu0 0.0
  %249 = vmatpush1.msra.mxu0 0.0
  %250 = vmatprep.subr.mxu0 0.0
  %251 = vmatpush1.msra.mxu0 0.0
  %252 = vmatprep.subr.mxu0 0.0
  %253 = vmatpush1.msra.mxu0 0.0
  %254 = vmatprep.subr.mxu0 0.0
  %255 = vmatpush1.msra.mxu0 0.0
  %256 = vmatprep.subr.mxu0 0.0
  %257 = vmatpush1.msra.mxu0 0.0
  %258 = vmatprep.subr.mxu0 0.0
  %259 = vmatpush1.msra.mxu0 0.0
  %260 = vmatprep.subr.mxu0 0.0
  %261 = vmatpush1.msra.mxu0 0.0
  %262 = vmatprep.subr.mxu0 0.0
  %263 = vmatpush1.msra.mxu0 0.0
  %264 = vmatprep.subr.mxu0 0.0
  %265 = vmatpush1.msra.mxu0 0.0
  %266 = vmatprep.subr.mxu0 0.0
  %267 = vmatpush1.msra.mxu0 0.0
  %268 = vmatprep.subr.mxu0 0.0
  %269 = vmatpush1.msra.mxu0 0.0
  %270 = vmatprep.subr.mxu0 0.0
  %271 = vmatpush1.msra.mxu0 0.0
  %272 = vmatprep.subr.mxu0 0.0
  %273 = vmatpush1.msra.mxu0 0.0
  %274 = vmatprep.subr.mxu0 0.0
  %275 = vmatpush1.msra.mxu0 0.0
  %276 = vmatprep.subr.mxu0 0.0
  %277 = vmatpush1.msra.mxu0 0.0
  %278 = vmatprep.subr.mxu0 0.0
  %279 = vmatpush1.msra.mxu0 0.0
  %280 = vmatprep.subr.mxu0 0.0
  %281 = vmatpush1.msra.mxu0 0.0
  %282 = vmatprep.subr.mxu0 0.0
  %283 = vmatpush1.msra.mxu0 0.0
  %284 = vmatprep.subr.mxu0 0.0
  %285 = vmatpush1.msra.mxu0 0.0
  %286 = vmatprep.subr.mxu0 0.0
  %287 = vmatpush1.msra.mxu0 0.0
  %288 = vmatprep.subr.mxu0 0.0
  %289 = vmatpush1.msra.mxu0 0.0
  %290 = vmatprep.subr.mxu0 0.0
  %291 = vmatpush1.msra.mxu0 0.0
  %292 = vmatprep.subr.mxu0 0.0
  %293 = vmatpush1.msra.mxu0 0.0
  %294 = vmatprep.subr.mxu0 0.0
  %295 = vmatpush1.msra.mxu0 0.0
  %296 = vmatprep.subr.mxu0 0.0
  %297 = vmatpush1.msra.mxu0 0.0
  %298 = vmatprep.subr.mxu0 0.0
  %299 = vmatpush1.msra.mxu0 0.0
  %300 = vmatprep.mubr.f32.mxu0 0.0
  %301 = vmatmul.mubr.f32.gmra.mrb[0].mxu0 %v57
  %v302 = vpop.f32.mrb[0].mxu0
  %v303 = vadd.f32 0.0, %v302
  %v304 = vpop.f32.mrb[0].mxu0
  %305 = vmatprep.mubr.f32.mxu0 0.0
  %306 = vmatmul.mubr.f32.gmra.mrb[0].mxu0 %v60
  %v307 = vpop.f32.mrb[0].mxu0
  %v308 = vadd.f32 0.0, %v307
  %v309 = vpop.f32.mrb[0].mxu0
  %310 = vmatprep.mubr.f32.mxu0 0.0
  %311 = vmatmul.mubr.f32.gmra.mrb[0].mxu0 %v63
  %v312 = vpop.f32.mrb[0].mxu0
  %v313 = vadd.f32 0.0, %v312
  %v314 = vpop.f32.mrb[0].mxu0
  %315 = vmatprep.mubr.f32.mxu0 0.0
  %316 = vmatmul.mubr.f32.gmra.mrb[0].mxu0 %v66
  %v317 = vpop.f32.mrb[0].mxu0
  %v318 = vadd.f32 0.0, %v317
  %v319 = vpop.f32.mrb[0].mxu0
  %320 = vdwg.mxu0
  %v321 = vmul.f32 %v303, %v160
  %v322 = vmul.f32 %v308, %v165
  %v323 = vmul.f32 %v313, %v170
  %v324 = vmul.f32 %v318, %v175
  %v325 = vadd.f32 %v321, %v188
  %v326 = vadd.f32 %v322, %v193
  %v327 = vadd.f32 %v323, %v198
  %v328 = vadd.f32 %v324, %v203
  %v329 = vsel %vm209, %v325, -inf
  %330 = vmax.xlane.f32.xlu0 %v329
  %v331 = vpop.xlane.xlu0 %330
  %v332 = vsel %vm209, %v326, -inf
  %333 = vmax.xlane.f32.xlu0 %v332
  %v334 = vpop.xlane.xlu0 %333
  %v335 = vsel %vm209, %v327, -inf
  %336 = vmax.xlane.f32.xlu0 %v335
  %v337 = vpop.xlane.xlu0 %336
  %v338 = vsel %vm209, %v328, -inf
  %339 = vmax.xlane.f32.xlu0 %v338
  %v340 = vpop.xlane.xlu0 %339
  %vm341 = vcmask 7168
  %v342 = vsel %vm341, %v212, %v331
  %v343 = vsel %vm341, %v215, %v334
  %v344 = vsel %vm341, %v218, %v337
  %v345 = vsel %vm341, %v221, %v340
  %v346 = vld [vmem:[%s5] sm:$0xf]
  %v347 = vld [vmem:[%s5 + $0x4] sm:$0xf]
  %v348 = vld [vmem:[%s5 + $0x8] sm:$0xf]
  %v349 = vld [vmem:[%s5 + $0xc] sm:$0xf]
  %v350 = vld [vmem:[%s5 + $0x10] sm:$0xf]
  %v351 = vld [vmem:[%s5 + $0x14] sm:$0xf]
  %v352 = vld [vmem:[%s5 + $0x18] sm:$0xf]
  %v353 = vld [vmem:[%s5 + $0x1c] sm:$0xf]
  %v354 = vld [vmem:[%s5 + $0x20] sm:$0xf]
  %v355 = vld [vmem:[%s5 + $0x24] sm:$0xf]
  %v356 = vld [vmem:[%s5 + $0x28] sm:$0xf]
  %v357 = vld [vmem:[%s5 + $0x2c] sm:$0xf]
  %v358 = vld [vmem:[%s5 + $0x30] sm:$0xf]
  %v359 = vld [vmem:[%s5 + $0x34] sm:$0xf]
  %v360 = vld [vmem:[%s5 + $0x38] sm:$0xf]
  %v361 = vld [vmem:[%s5 + $0x3c] sm:$0xf]
  %v362 = vld [vmem:[%s5 + $0x40] sm:$0xf]
  %v363 = vld [vmem:[%s5 + $0x44] sm:$0xf]
  %v364 = vld [vmem:[%s5 + $0x48] sm:$0xf]
  %v365 = vld [vmem:[%s5 + $0x4c] sm:$0xf]
  %v366 = vld [vmem:[%s5 + $0x50] sm:$0xf]
  %v367 = vld [vmem:[%s5 + $0x54] sm:$0xf]
  %v368 = vld [vmem:[%s5 + $0x58] sm:$0xf]
  %v369 = vld [vmem:[%s5 + $0x5c] sm:$0xf]
  %v370 = vld [vmem:[%s5 + $0x60] sm:$0xf]
  %v371 = vld [vmem:[%s5 + $0x64] sm:$0xf]
  %v372 = vld [vmem:[%s5 + $0x68] sm:$0xf]
  %v373 = vld [vmem:[%s5 + $0x6c] sm:$0xf]
  %v374 = vld [vmem:[%s5 + $0x70] sm:$0xf]
  %v375 = vld [vmem:[%s5 + $0x74] sm:$0xf]
  %v376 = vld [vmem:[%s5 + $0x78] sm:$0xf]
  %v377 = vld [vmem:[%s5 + $0x7c] sm:$0xf]
  %v378 = vld [vmem:[%s5 + $0x80] sm:$0xf]
  %v379 = vld [vmem:[%s5 + $0x84] sm:$0xf]
  %v380 = vld [vmem:[%s5 + $0x88] sm:$0xf]
  %v381 = vld [vmem:[%s5 + $0x8c] sm:$0xf]
  %v382 = vld [vmem:[%s5 + $0x90] sm:$0xf]
  %v383 = vld [vmem:[%s5 + $0x94] sm:$0xf]
  %v384 = vld [vmem:[%s5 + $0x98] sm:$0xf]
  %v385 = vld [vmem:[%s5 + $0x9c] sm:$0xf]
  %v386 = vld [vmem:[%s5 + $0xa0] sm:$0xf]
  %v387 = vld [vmem:[%s5 + $0xa4] sm:$0xf]
  %v388 = vld [vmem:[%s5 + $0xa8] sm:$0xf]
  %v389 = vld [vmem:[%s5 + $0xac] sm:$0xf]
  %v390 = vld [vmem:[%s5 + $0xb0] sm:$0xf]
  %v391 = vld [vmem:[%s5 + $0xb4] sm:$0xf]
  %v392 = vld [vmem:[%s5 + $0xb8] sm:$0xf]
  %v393 = vld [vmem:[%s5 + $0xbc] sm:$0xf]
  %v394 = vld [vmem:[%s5 + $0xc0] sm:$0xf]
  %v395 = vld [vmem:[%s5 + $0xc4] sm:$0xf]
  %v396 = vld [vmem:[%s5 + $0xc8] sm:$0xf]
  %v397 = vld [vmem:[%s5 + $0xcc] sm:$0xf]
  %v398 = vld [vmem:[%s5 + $0xd0] sm:$0xf]
  %v399 = vld [vmem:[%s5 + $0xd4] sm:$0xf]
  %v400 = vld [vmem:[%s5 + $0xd8] sm:$0xf]
  %v401 = vld [vmem:[%s5 + $0xdc] sm:$0xf]
  %v402 = vld [vmem:[%s5 + $0xe0] sm:$0xf]
  %v403 = vld [vmem:[%s5 + $0xe4] sm:$0xf]
  %v404 = vld [vmem:[%s5 + $0xe8] sm:$0xf]
  %v405 = vld [vmem:[%s5 + $0xec] sm:$0xf]
  %v406 = vld [vmem:[%s5 + $0xf0] sm:$0xf]
  %v407 = vld [vmem:[%s5 + $0xf4] sm:$0xf]
  %v408 = vld [vmem:[%s5 + $0xf8] sm:$0xf]
  %v409 = vld [vmem:[%s5 + $0xfc] sm:$0xf]
  %v410 = vpack.c.bf16 %v343, %v342
  %v411 = vpack.c.bf16 %v345, %v344
  %v412 = vld [vmem:[%s6] sm:$0xff]
  %v413 = vld [vmem:[%s6 + $0x8] sm:$0xff]
  %v414 = vld [vmem:[%s6 + $0x10] sm:$0xff]
  %v415 = vld [vmem:[%s6 + $0x18] sm:$0xff]
  %v416 = vld [vmem:[%s6 + $0x20] sm:$0xff]
  %v417 = vld [vmem:[%s6 + $0x28] sm:$0xff]
  %v418 = vld [vmem:[%s6 + $0x30] sm:$0xff]
  %v419 = vld [vmem:[%s6 + $0x38] sm:$0xff]
  %v420 = vld [vmem:[%s6 + $0x40] sm:$0xff]
  %v421 = vld [vmem:[%s6 + $0x48] sm:$0xff]
  %v422 = vld [vmem:[%s6 + $0x50] sm:$0xff]
  %v423 = vld [vmem:[%s6 + $0x58] sm:$0xff]
  %v424 = vld [vmem:[%s6 + $0x60] sm:$0xff]
  %v425 = vld [vmem:[%s6 + $0x68] sm:$0xff]
  %v426 = vld [vmem:[%s6 + $0x70] sm:$0xff]
  %v427 = vld [vmem:[%s6 + $0x78] sm:$0xff]
  %v428 = vld [vmem:[%s6 + $0x80] sm:$0xff]
  %v429 = vld [vmem:[%s6 + $0x88] sm:$0xff]
  %v430 = vld [vmem:[%s6 + $0x90] sm:$0xff]
  %v431 = vld [vmem:[%s6 + $0x98] sm:$0xff]
  %v432 = vld [vmem:[%s6 + $0xa0] sm:$0xff]
  %v433 = vld [vmem:[%s6 + $0xa8] sm:$0xff]
  %v434 = vld [vmem:[%s6 + $0xb0] sm:$0xff]
  %v435 = vld [vmem:[%s6 + $0xb8] sm:$0xff]
  %v436 = vld [vmem:[%s6 + $0xc0] sm:$0xff]
  %v437 = vld [vmem:[%s6 + $0xc8] sm:$0xff]
  %v438 = vld [vmem:[%s6 + $0xd0] sm:$0xff]
  %v439 = vld [vmem:[%s6 + $0xd8] sm:$0xff]
  %v440 = vld [vmem:[%s6 + $0xe0] sm:$0xff]
  %v441 = vld [vmem:[%s6 + $0xe8] sm:$0xff]
  %v442 = vld [vmem:[%s6 + $0xf0] sm:$0xff]
  %v443 = vld [vmem:[%s6 + $0xf8] sm:$0xff]
  %v444 = vld [vmem:[%s6 + $0x100] sm:$0xff]
  %v445 = vld [vmem:[%s6 + $0x108] sm:$0xff]
  %v446 = vld [vmem:[%s6 + $0x110] sm:$0xff]
  %v447 = vld [vmem:[%s6 + $0x118] sm:$0xff]
  %v448 = vld [vmem:[%s6 + $0x120] sm:$0xff]
  %v449 = vld [vmem:[%s6 + $0x128] sm:$0xff]
  %v450 = vld [vmem:[%s6 + $0x130] sm:$0xff]
  %v451 = vld [vmem:[%s6 + $0x138] sm:$0xff]
  %v452 = vld [vmem:[%s6 + $0x140] sm:$0xff]
  %v453 = vld [vmem:[%s6 + $0x148] sm:$0xff]
  %v454 = vld [vmem:[%s6 + $0x150] sm:$0xff]
  %v455 = vld [vmem:[%s6 + $0x158] sm:$0xff]
  %v456 = vld [vmem:[%s6 + $0x160] sm:$0xff]
  %v457 = vld [vmem:[%s6 + $0x168] sm:$0xff]
  %v458 = vld [vmem:[%s6 + $0x170] sm:$0xff]
  %v459 = vld [vmem:[%s6 + $0x178] sm:$0xff]
  %v460 = vld [vmem:[%s6 + $0x180] sm:$0xff]
  %v461 = vld [vmem:[%s6 + $0x188] sm:$0xff]
  %v462 = vld [vmem:[%s6 + $0x190] sm:$0xff]
  %v463 = vld [vmem:[%s6 + $0x198] sm:$0xff]
  %v464 = vld [vmem:[%s6 + $0x1a0] sm:$0xff]
  %v465 = vld [vmem:[%s6 + $0x1a8] sm:$0xff]
  %v466 = vld [vmem:[%s6 + $0x1b0] sm:$0xff]
  %v467 = vld [vmem:[%s6 + $0x1b8] sm:$0xff]
  %v468 = vld [vmem:[%s6 + $0x1c0] sm:$0xff]
  %v469 = vld [vmem:[%s6 + $0x1c8] sm:$0xff]
  %v470 = vld [vmem:[%s6 + $0x1d0] sm:$0xff]
  %v471 = vld [vmem:[%s6 + $0x1d8] sm:$0xff]
  %v472 = vld [vmem:[%s6 + $0x1e0] sm:$0xff]
  %v473 = vld [vmem:[%s6 + $0x1e8] sm:$0xff]
  %v474 = vld [vmem:[%s6 + $0x1f0] sm:$0xff]
  %v475 = vld [vmem:[%s6 + $0x1f8] sm:$0xff]
  %477 = vset.pattern.permute.xlu0 0
  %478 = vperm.xlu0 %477, %v412
  %v479 = vpop.permute.xlu0 %478
  %482 = vset.pattern.permute.xlu0 0
  %483 = vperm.xlu0 %482, %v413
  %v484 = vpop.permute.xlu0 %483
  %487 = vset.pattern.permute.xlu0 0
  %488 = vperm.xlu0 %487, %v414
  %v489 = vpop.permute.xlu0 %488
  %492 = vset.pattern.permute.xlu0 0
  %493 = vperm.xlu0 %492, %v415
  %v494 = vpop.permute.xlu0 %493
  %497 = vset.pattern.permute.xlu0 0
  %498 = vperm.xlu0 %497, %v416
  %v499 = vpop.permute.xlu0 %498
  %502 = vset.pattern.permute.xlu0 0
  %503 = vperm.xlu0 %502, %v417
  %v504 = vpop.permute.xlu0 %503
  %507 = vset.pattern.permute.xlu0 0
  %508 = vperm.xlu0 %507, %v418
  %v509 = vpop.permute.xlu0 %508
  %512 = vset.pattern.permute.xlu0 0
  %513 = vperm.xlu0 %512, %v419
  %v514 = vpop.permute.xlu0 %513
  %517 = vset.pattern.permute.xlu0 0
  %518 = vperm.xlu0 %517, %v420
  %v519 = vpop.permute.xlu0 %518
  %522 = vset.pattern.permute.xlu0 0
  %523 = vperm.xlu0 %522, %v421
  %v524 = vpop.permute.xlu0 %523
  %527 = vset.pattern.permute.xlu0 0
  %528 = vperm.xlu0 %527, %v422
  %v529 = vpop.permute.xlu0 %528
  %532 = vset.pattern.permute.xlu0 0
  %533 = vperm.xlu0 %532, %v423
  %v534 = vpop.permute.xlu0 %533
  %537 = vset.pattern.permute.xlu0 0
  %538 = vperm.xlu0 %537, %v424
  %v539 = vpop.permute.xlu0 %538
  %542 = vset.pattern.permute.xlu0 0
  %543 = vperm.xlu0 %542, %v425
  %v544 = vpop.permute.xlu0 %543
  %547 = vset.pattern.permute.xlu0 0
  %548 = vperm.xlu0 %547, %v426
  %v549 = vpop.permute.xlu0 %548
  %552 = vset.pattern.permute.xlu0 0
  %553 = vperm.xlu0 %552, %v427
  %v554 = vpop.permute.xlu0 %553
  %557 = vset.pattern.permute.xlu0 0
  %558 = vperm.xlu0 %557, %v428
  %v559 = vpop.permute.xlu0 %558
  %562 = vset.pattern.permute.xlu0 0
  %563 = vperm.xlu0 %562, %v429
  %v564 = vpop.permute.xlu0 %563
  %567 = vset.pattern.permute.xlu0 0
  %568 = vperm.xlu0 %567, %v430
  %v569 = vpop.permute.xlu0 %568
  %572 = vset.pattern.permute.xlu0 0
  %573 = vperm.xlu0 %572, %v431
  %v574 = vpop.permute.xlu0 %573
  %577 = vset.pattern.permute.xlu0 0
  %578 = vperm.xlu0 %577, %v432
  %v579 = vpop.permute.xlu0 %578
  %582 = vset.pattern.permute.xlu0 0
  %583 = vperm.xlu0 %582, %v433
  %v584 = vpop.permute.xlu0 %583
  %587 = vset.pattern.permute.xlu0 0
  %588 = vperm.xlu0 %587, %v434
  %v589 = vpop.permute.xlu0 %588
  %592 = vset.pattern.permute.xlu0 0
  %593 = vperm.xlu0 %592, %v435
  %v594 = vpop.permute.xlu0 %593
  %597 = vset.pattern.permute.xlu0 0
  %598 = vperm.xlu0 %597, %v436
  %v599 = vpop.permute.xlu0 %598
  %602 = vset.pattern.permute.xlu0 0
  %603 = vperm.xlu0 %602, %v437
  %v604 = vpop.permute.xlu0 %603
  %607 = vset.pattern.permute.xlu0 0
  %608 = vperm.xlu0 %607, %v438
  %v609 = vpop.permute.xlu0 %608
  %612 = vset.pattern.permute.xlu0 0
  %613 = vperm.xlu0 %612, %v439
  %v614 = vpop.permute.xlu0 %613
  %617 = vset.pattern.permute.xlu0 0
  %618 = vperm.xlu0 %617, %v440
  %v619 = vpop.permute.xlu0 %618
  %622 = vset.pattern.permute.xlu0 0
  %623 = vperm.xlu0 %622, %v441
  %v624 = vpop.permute.xlu0 %623
  %627 = vset.pattern.permute.xlu0 0
  %628 = vperm.xlu0 %627, %v442
  %v629 = vpop.permute.xlu0 %628
  %632 = vset.pattern.permute.xlu0 0
  %633 = vperm.xlu0 %632, %v443
  %v634 = vpop.permute.xlu0 %633
  %637 = vset.pattern.permute.xlu0 0
  %638 = vperm.xlu0 %637, %v444
  %v639 = vpop.permute.xlu0 %638
  %642 = vset.pattern.permute.xlu0 0
  %643 = vperm.xlu0 %642, %v445
  %v644 = vpop.permute.xlu0 %643
  %647 = vset.pattern.permute.xlu0 0
  %648 = vperm.xlu0 %647, %v446
  %v649 = vpop.permute.xlu0 %648
  %652 = vset.pattern.permute.xlu0 0
  %653 = vperm.xlu0 %652, %v447
  %v654 = vpop.permute.xlu0 %653
  %657 = vset.pattern.permute.xlu0 0
  %658 = vperm.xlu0 %657, %v448
  %v659 = vpop.permute.xlu0 %658
  %662 = vset.pattern.permute.xlu0 0
  %663 = vperm.xlu0 %662, %v449
  %v664 = vpop.permute.xlu0 %663
  %667 = vset.pattern.permute.xlu0 0
  %668 = vperm.xlu0 %667, %v450
  %v669 = vpop.permute.xlu0 %668
  %672 = vset.pattern.permute.xlu0 0
  %673 = vperm.xlu0 %672, %v451
  %v674 = vpop.permute.xlu0 %673
  %677 = vset.pattern.permute.xlu0 0
  %678 = vperm.xlu0 %677, %v452
  %v679 = vpop.permute.xlu0 %678
  %682 = vset.pattern.permute.xlu0 0
  %683 = vperm.xlu0 %682, %v453
  %v684 = vpop.permute.xlu0 %683
  %687 = vset.pattern.permute.xlu0 0
  %688 = vperm.xlu0 %687, %v454
  %v689 = vpop.permute.xlu0 %688
  %692 = vset.pattern.permute.xlu0 0
  %693 = vperm.xlu0 %692, %v455
  %v694 = vpop.permute.xlu0 %693
  %697 = vset.pattern.permute.xlu0 0
  %698 = vperm.xlu0 %697, %v456
  %v699 = vpop.permute.xlu0 %698
  %702 = vset.pattern.permute.xlu0 0
  %703 = vperm.xlu0 %702, %v457
  %v704 = vpop.permute.xlu0 %703
  %707 = vset.pattern.permute.xlu0 0
  %708 = vperm.xlu0 %707, %v458
  %v709 = vpop.permute.xlu0 %708
  %712 = vset.pattern.permute.xlu0 0
  %713 = vperm.xlu0 %712, %v459
  %v714 = vpop.permute.xlu0 %713
  %717 = vset.pattern.permute.xlu0 0
  %718 = vperm.xlu0 %717, %v460
  %v719 = vpop.permute.xlu0 %718
  %722 = vset.pattern.permute.xlu0 0
  %723 = vperm.xlu0 %722, %v461
  %v724 = vpop.permute.xlu0 %723
  %727 = vset.pattern.permute.xlu0 0
  %728 = vperm.xlu0 %727, %v462
  %v729 = vpop.permute.xlu0 %728
  %732 = vset.pattern.permute.xlu0 0
  %733 = vperm.xlu0 %732, %v463
  %v734 = vpop.permute.xlu0 %733
  %737 = vset.pattern.permute.xlu0 0
  %738 = vperm.xlu0 %737, %v464
  %v739 = vpop.permute.xlu0 %738
  %742 = vset.pattern.permute.xlu0 0
  %743 = vperm.xlu0 %742, %v465
  %v744 = vpop.permute.xlu0 %743
  %747 = vset.pattern.permute.xlu0 0
  %748 = vperm.xlu0 %747, %v466
  %v749 = vpop.permute.xlu0 %748
  %752 = vset.pattern.permute.xlu0 0
  %753 = vperm.xlu0 %752, %v467
  %v754 = vpop.permute.xlu0 %753
  %757 = vset.pattern.permute.xlu0 0
  %758 = vperm.xlu0 %757, %v468
  %v759 = vpop.permute.xlu0 %758
  %762 = vset.pattern.permute.xlu0 0
  %763 = vperm.xlu0 %762, %v469
  %v764 = vpop.permute.xlu0 %763
  %767 = vset.pattern.permute.xlu0 0
  %768 = vperm.xlu0 %767, %v470
  %v769 = vpop.permute.xlu0 %768
  %772 = vset.pattern.permute.xlu0 0
  %773 = vperm.xlu0 %772, %v471
  %v774 = vpop.permute.xlu0 %773
  %777 = vset.pattern.permute.xlu0 0
  %778 = vperm.xlu0 %777, %v472
  %v779 = vpop.permute.xlu0 %778
  %782 = vset.pattern.permute.xlu0 0
  %783 = vperm.xlu0 %782, %v473
  %v784 = vpop.permute.xlu0 %783
  %787 = vset.pattern.permute.xlu0 0
  %788 = vperm.xlu0 %787, %v474
  %v789 = vpop.permute.xlu0 %788
  %792 = vset.pattern.permute.xlu0 0
  %793 = vperm.xlu0 %792, %v475
  %v794 = vpop.permute.xlu0 %793
  %v860 = vunpack.c.l.b16 %v346
  %v861 = vunpack.c.l.b16 %v347
  %v862 = vunpack.c.l.b16 %v348
  %v863 = vunpack.c.l.b16 %v349
  %v864 = vunpack.c.l.b16 %v350
  %v865 = vunpack.c.l.b16 %v351
  %v866 = vunpack.c.l.b16 %v352
  %v867 = vunpack.c.l.b16 %v353
  %v868 = vunpack.c.l.b16 %v354
  %v869 = vunpack.c.l.b16 %v355
  %v870 = vunpack.c.l.b16 %v356
  %v871 = vunpack.c.l.b16 %v357
  %v872 = vunpack.c.l.b16 %v358
  %v873 = vunpack.c.l.b16 %v359
  %v874 = vunpack.c.l.b16 %v360
  %v875 = vunpack.c.l.b16 %v361
  %v876 = vunpack.c.l.b16 %v362
  %v877 = vunpack.c.l.b16 %v363
  %v878 = vunpack.c.l.b16 %v364
  %v879 = vunpack.c.l.b16 %v365
  %v880 = vunpack.c.l.b16 %v366
  %v881 = vunpack.c.l.b16 %v367
  %v882 = vunpack.c.l.b16 %v368
  %v883 = vunpack.c.l.b16 %v369
  %v884 = vunpack.c.l.b16 %v370
  %v885 = vunpack.c.l.b16 %v371
  %v886 = vunpack.c.l.b16 %v372
  %v887 = vunpack.c.l.b16 %v373
  %v888 = vunpack.c.l.b16 %v374
  %v889 = vunpack.c.l.b16 %v375
  %v890 = vunpack.c.l.b16 %v376
  %v891 = vunpack.c.l.b16 %v377
  %v892 = vunpack.c.l.b16 %v378
  %v893 = vunpack.c.l.b16 %v379
  %v894 = vunpack.c.l.b16 %v380
  %v895 = vunpack.c.l.b16 %v381
  %v896 = vunpack.c.l.b16 %v382
  %v897 = vunpack.c.l.b16 %v383
  %v898 = vunpack.c.l.b16 %v384
  %v899 = vunpack.c.l.b16 %v385
  %v900 = vunpack.c.l.b16 %v386
  %v901 = vunpack.c.l.b16 %v387
  %v902 = vunpack.c.l.b16 %v388
  %v903 = vunpack.c.l.b16 %v389
  %v904 = vunpack.c.l.b16 %v390
  %v905 = vunpack.c.l.b16 %v391
  %v906 = vunpack.c.l.b16 %v392
  %v907 = vunpack.c.l.b16 %v393
  %v908 = vunpack.c.l.b16 %v394
  %v909 = vunpack.c.l.b16 %v395
  %v910 = vunpack.c.l.b16 %v396
  %v911 = vunpack.c.l.b16 %v397
  %v912 = vunpack.c.l.b16 %v398
  %v913 = vunpack.c.l.b16 %v399
  %v914 = vunpack.c.l.b16 %v400
  %v915 = vunpack.c.l.b16 %v401
  %v916 = vunpack.c.l.b16 %v402
  %v917 = vunpack.c.l.b16 %v403
  %v918 = vunpack.c.l.b16 %v404
  %v919 = vunpack.c.l.b16 %v405
  %v920 = vunpack.c.l.b16 %v406
  %v921 = vunpack.c.l.b16 %v407
  %v922 = vunpack.c.l.b16 %v408
  %v923 = vunpack.c.l.b16 %v409
  %v924 = vpack.c.b16 %v861, %v860
  %v925 = vpack.c.b16 %v863, %v862
  %v926 = vpack.c.b16 %v865, %v864
  %v927 = vpack.c.b16 %v867, %v866
  %v928 = vpack.c.b16 %v869, %v868
  %v929 = vpack.c.b16 %v871, %v870
  %v930 = vpack.c.b16 %v873, %v872
  %v931 = vpack.c.b16 %v875, %v874
  %v932 = vpack.c.b16 %v877, %v876
  %v933 = vpack.c.b16 %v879, %v878
  %v934 = vpack.c.b16 %v881, %v880
  %v935 = vpack.c.b16 %v883, %v882
  %v936 = vpack.c.b16 %v885, %v884
  %v937 = vpack.c.b16 %v887, %v886
  %v938 = vpack.c.b16 %v889, %v888
  %v939 = vpack.c.b16 %v891, %v890
  %v940 = vpack.c.b16 %v893, %v892
  %v941 = vpack.c.b16 %v895, %v894
  %v942 = vpack.c.b16 %v897, %v896
  %v943 = vpack.c.b16 %v899, %v898
  %v944 = vpack.c.b16 %v901, %v900
  %v945 = vpack.c.b16 %v903, %v902
  %v946 = vpack.c.b16 %v905, %v904
  %v947 = vpack.c.b16 %v907, %v906
  %v948 = vpack.c.b16 %v909, %v908
  %v949 = vpack.c.b16 %v911, %v910
  %v950 = vpack.c.b16 %v913, %v912
  %v951 = vpack.c.b16 %v915, %v914
  %v952 = vpack.c.b16 %v917, %v916
  %v953 = vpack.c.b16 %v919, %v918
  %v954 = vpack.c.b16 %v921, %v920
  %v955 = vpack.c.b16 %v923, %v922
  %v957 = vsel %vm55, %v924, 0
  %v960 = vsel %vm55, %v925, 0
  %v963 = vsel %vm55, %v926, 0
  %v966 = vsel %vm55, %v927, 0
  %v969 = vsel %vm55, %v928, 0
  %v972 = vsel %vm55, %v929, 0
  %v975 = vsel %vm55, %v930, 0
  %v978 = vsel %vm55, %v931, 0
  %v981 = vsel %vm55, %v932, 0
  %v984 = vsel %vm55, %v933, 0
  %v987 = vsel %vm55, %v934, 0
  %v990 = vsel %vm55, %v935, 0
  %v993 = vsel %vm55, %v936, 0
  %v996 = vsel %vm55, %v937, 0
  %v999 = vsel %vm55, %v938, 0
  %v1002 = vsel %vm55, %v939, 0
  %v1005 = vsel %vm55, %v940, 0
  %v1008 = vsel %vm55, %v941, 0
  %v1011 = vsel %vm55, %v942, 0
  %v1014 = vsel %vm55, %v943, 0
  %v1017 = vsel %vm55, %v944, 0
  %v1020 = vsel %vm55, %v945, 0
  %v1023 = vsel %vm55, %v946, 0
  %v1026 = vsel %vm55, %v947, 0
  %v1029 = vsel %vm55, %v948, 0
  %v1032 = vsel %vm55, %v949, 0
  %v1035 = vsel %vm55, %v950, 0
  %v1038 = vsel %vm55, %v951, 0
  %v1041 = vsel %vm55, %v952, 0
  %v1044 = vsel %vm55, %v953, 0
  %v1047 = vsel %vm55, %v954, 0
  %v1050 = vsel %vm55, %v955, 0
  %1052 = vmatprep.subr.bf16.mxu0 0
  %1053 = vmatpush1.bf16.msra.mxu0 %v410
  %1054 = vmatprep.subr.bf16.mxu0 0
  %1055 = vmatpush1.bf16.msra.mxu0 %v411
  %1056 = vmatprep.subr.bf16.mxu0 0
  %1057 = vmatpush1.bf16.msra.mxu0 0
  %1058 = vmatprep.subr.bf16.mxu0 0
  %1059 = vmatpush1.bf16.msra.mxu0 0
  %1060 = vmatprep.subr.bf16.mxu0 0
  %1061 = vmatpush1.bf16.msra.mxu0 0
  %1062 = vmatprep.subr.bf16.mxu0 0
  %1063 = vmatpush1.bf16.msra.mxu0 0
  %1064 = vmatprep.subr.bf16.mxu0 0
  %1065 = vmatpush1.bf16.msra.mxu0 0
  %1066 = vmatprep.subr.bf16.mxu0 0
  %1067 = vmatpush1.bf16.msra.mxu0 0
  %1068 = vmatprep.subr.bf16.mxu0 0
  %1069 = vmatpush1.bf16.msra.mxu0 0
  %1070 = vmatprep.subr.bf16.mxu0 0
  %1071 = vmatpush1.bf16.msra.mxu0 0
  %1072 = vmatprep.subr.bf16.mxu0 0
  %1073 = vmatpush1.bf16.msra.mxu0 0
  %1074 = vmatprep.subr.bf16.mxu0 0
  %1075 = vmatpush1.bf16.msra.mxu0 0
  %1076 = vmatprep.subr.bf16.mxu0 0
  %1077 = vmatpush1.bf16.msra.mxu0 0
  %1078 = vmatprep.subr.bf16.mxu0 0
  %1079 = vmatpush1.bf16.msra.mxu0 0
  %1080 = vmatprep.subr.bf16.mxu0 0
  %1081 = vmatpush1.bf16.msra.mxu0 0
  %1082 = vmatprep.subr.bf16.mxu0 0
  %1083 = vmatpush1.bf16.msra.mxu0 0
  %1084 = vmatprep.mubr.bf16.mxu0 0
  %1085 = vmatmul.mubr.bf16.gmra.mrb[0].mxu0 %v957
  %v1086 = vpop.f32.mrb[0].mxu0
  %v1087 = vadd.f32 %v479, %v1086
  %v1088 = vpop.f32.mrb[0].mxu0
  %v1089 = vpop.f32.mrb[0].mxu0
  %v1090 = vadd.f32 %v484, %v1089
  %v1091 = vpop.f32.mrb[0].mxu0
  %1092 = vmatprep.mubr.bf16.mxu0 0
  %1093 = vmatmul.mubr.bf16.gmra.mrb[0].mxu0 %v960
  %v1094 = vpop.f32.mrb[0].mxu0
  %v1095 = vadd.f32 %v489, %v1094
  %v1096 = vpop.f32.mrb[0].mxu0
  %v1097 = vpop.f32.mrb[0].mxu0
  %v1098 = vadd.f32 %v494, %v1097
  %v1099 = vpop.f32.mrb[0].mxu0
  %1100 = vmatprep.mubr.bf16.mxu0 0
  %1101 = vmatmul.mubr.bf16.gmra.mrb[0].mxu0 %v963
  %v1102 = vpop.f32.mrb[0].mxu0
  %v1103 = vadd.f32 %v499, %v1102
  %v1104 = vpop.f32.mrb[0].mxu0
  %v1105 = vpop.f32.mrb[0].mxu0
  %v1106 = vadd.f32 %v504, %v1105
  %v1107 = vpop.f32.mrb[0].mxu0
  %1108 = vmatprep.mubr.bf16.mxu0 0
  %1109 = vmatmul.mubr.bf16.gmra.mrb[0].mxu0 %v966
  %v1110 = vpop.f32.mrb[0].mxu0
  %v1111 = vadd.f32 %v509, %v1110
  %v1112 = vpop.f32.mrb[0].mxu0
  %v1113 = vpop.f32.mrb[0].mxu0
  %v1114 = vadd.f32 %v514, %v1113
  %v1115 = vpop.f32.mrb[0].mxu0
  %1116 = vmatprep.mubr.bf16.mxu0 0
  %1117 = vmatmul.mubr.bf16.gmra.mrb[0].mxu0 %v969
  %v1118 = vpop.f32.mrb[0].mxu0
  %v1119 = vadd.f32 %v519, %v1118
  %v1120 = vpop.f32.mrb[0].mxu0
  %v1121 = vpop.f32.mrb[0].mxu0
  %v1122 = vadd.f32 %v524, %v1121
  %v1123 = vpop.f32.mrb[0].mxu0
  %1124 = vmatprep.mubr.bf16.mxu0 0
  %1125 = vmatmul.mubr.bf16.gmra.mrb[0].mxu0 %v972
  %v1126 = vpop.f32.mrb[0].mxu0
  %v1127 = vadd.f32 %v529, %v1126
  %v1128 = vpop.f32.mrb[0].mxu0
  %v1129 = vpop.f32.mrb[0].mxu0
  %v1130 = vadd.f32 %v534, %v1129
  %v1131 = vpop.f32.mrb[0].mxu0
  %1132 = vmatprep.mubr.bf16.mxu0 0
  %1133 = vmatmul.mubr.bf16.gmra.mrb[0].mxu0 %v975
  %v1134 = vpop.f32.mrb[0].mxu0
  %v1135 = vadd.f32 %v539, %v1134
  %v1136 = vpop.f32.mrb[0].mxu0
  %v1137 = vpop.f32.mrb[0].mxu0
  %v1138 = vadd.f32 %v544, %v1137
  %v1139 = vpop.f32.mrb[0].mxu0
  %1140 = vmatprep.mubr.bf16.mxu0 0
  %1141 = vmatmul.mubr.bf16.gmra.mrb[0].mxu0 %v978
  %v1142 = vpop.f32.mrb[0].mxu0
  %v1143 = vadd.f32 %v549, %v1142
  %v1144 = vpop.f32.mrb[0].mxu0
  %v1145 = vpop.f32.mrb[0].mxu0
  %v1146 = vadd.f32 %v554, %v1145
  %v1147 = vpop.f32.mrb[0].mxu0
  %1148 = vmatprep.mubr.bf16.mxu0 0
  %1149 = vmatmul.mubr.bf16.gmra.mrb[0].mxu0 %v981
  %v1150 = vpop.f32.mrb[0].mxu0
  %v1151 = vadd.f32 %v559, %v1150
  %v1152 = vpop.f32.mrb[0].mxu0
  %v1153 = vpop.f32.mrb[0].mxu0
  %v1154 = vadd.f32 %v564, %v1153
  %v1155 = vpop.f32.mrb[0].mxu0
  %1156 = vmatprep.mubr.bf16.mxu0 0
  %1157 = vmatmul.mubr.bf16.gmra.mrb[0].mxu0 %v984
  %v1158 = vpop.f32.mrb[0].mxu0
  %v1159 = vadd.f32 %v569, %v1158
  %v1160 = vpop.f32.mrb[0].mxu0
  %v1161 = vpop.f32.mrb[0].mxu0
  %v1162 = vadd.f32 %v574, %v1161
  %v1163 = vpop.f32.mrb[0].mxu0
  %1164 = vmatprep.mubr.bf16.mxu0 0
  %1165 = vmatmul.mubr.bf16.gmra.mrb[0].mxu0 %v987
  %v1166 = vpop.f32.mrb[0].mxu0
  %v1167 = vadd.f32 %v579, %v1166
  %v1168 = vpop.f32.mrb[0].mxu0
  %v1169 = vpop.f32.mrb[0].mxu0
  %v1170 = vadd.f32 %v584, %v1169
  %v1171 = vpop.f32.mrb[0].mxu0
  %1172 = vmatprep.mubr.bf16.mxu0 0
  %1173 = vmatmul.mubr.bf16.gmra.mrb[0].mxu0 %v990
  %v1174 = vpop.f32.mrb[0].mxu0
  %v1175 = vadd.f32 %v589, %v1174
  %v1176 = vpop.f32.mrb[0].mxu0
  %v1177 = vpop.f32.mrb[0].mxu0
  %v1178 = vadd.f32 %v594, %v1177
  %v1179 = vpop.f32.mrb[0].mxu0
  %1180 = vmatprep.mubr.bf16.mxu0 0
  %1181 = vmatmul.mubr.bf16.gmra.mrb[0].mxu0 %v993
  %v1182 = vpop.f32.mrb[0].mxu0
  %v1183 = vadd.f32 %v599, %v1182
  %v1184 = vpop.f32.mrb[0].mxu0
  %v1185 = vpop.f32.mrb[0].mxu0
  %v1186 = vadd.f32 %v604, %v1185
  %v1187 = vpop.f32.mrb[0].mxu0
  %1188 = vmatprep.mubr.bf16.mxu0 0
  %1189 = vmatmul.mubr.bf16.gmra.mrb[0].mxu0 %v996
  %v1190 = vpop.f32.mrb[0].mxu0
  %v1191 = vadd.f32 %v609, %v1190
  %v1192 = vpop.f32.mrb[0].mxu0
  %v1193 = vpop.f32.mrb[0].mxu0
  %v1194 = vadd.f32 %v614, %v1193
  %v1195 = vpop.f32.mrb[0].mxu0
  %1196 = vmatprep.mubr.bf16.mxu0 0
  %1197 = vmatmul.mubr.bf16.gmra.mrb[0].mxu0 %v999
  %v1198 = vpop.f32.mrb[0].mxu0
  %v1199 = vadd.f32 %v619, %v1198
  %v1200 = vpop.f32.mrb[0].mxu0
  %v1201 = vpop.f32.mrb[0].mxu0
  %v1202 = vadd.f32 %v624, %v1201
  %v1203 = vpop.f32.mrb[0].mxu0
  %1204 = vmatprep.mubr.bf16.mxu0 0
  %1205 = vmatmul.mubr.bf16.gmra.mrb[0].mxu0 %v1002
  %v1206 = vpop.f32.mrb[0].mxu0
  %v1207 = vadd.f32 %v629, %v1206
  %v1208 = vpop.f32.mrb[0].mxu0
  %v1209 = vpop.f32.mrb[0].mxu0
  %v1210 = vadd.f32 %v634, %v1209
  %v1211 = vpop.f32.mrb[0].mxu0
  %1212 = vmatprep.mubr.bf16.mxu0 0
  %1213 = vmatmul.mubr.bf16.gmra.mrb[0].mxu0 %v1005
  %v1214 = vpop.f32.mrb[0].mxu0
  %v1215 = vadd.f32 %v639, %v1214
  %v1216 = vpop.f32.mrb[0].mxu0
  %v1217 = vpop.f32.mrb[0].mxu0
  %v1218 = vadd.f32 %v644, %v1217
  %v1219 = vpop.f32.mrb[0].mxu0
  %1220 = vmatprep.mubr.bf16.mxu0 0
  %1221 = vmatmul.mubr.bf16.gmra.mrb[0].mxu0 %v1008
  %v1222 = vpop.f32.mrb[0].mxu0
  %v1223 = vadd.f32 %v649, %v1222
  %v1224 = vpop.f32.mrb[0].mxu0
  %v1225 = vpop.f32.mrb[0].mxu0
  %v1226 = vadd.f32 %v654, %v1225
  %v1227 = vpop.f32.mrb[0].mxu0
  %1228 = vmatprep.mubr.bf16.mxu0 0
  %1229 = vmatmul.mubr.bf16.gmra.mrb[0].mxu0 %v1011
  %v1230 = vpop.f32.mrb[0].mxu0
  %v1231 = vadd.f32 %v659, %v1230
  %v1232 = vpop.f32.mrb[0].mxu0
  %v1233 = vpop.f32.mrb[0].mxu0
  %v1234 = vadd.f32 %v664, %v1233
  %v1235 = vpop.f32.mrb[0].mxu0
  %1236 = vmatprep.mubr.bf16.mxu0 0
  %1237 = vmatmul.mubr.bf16.gmra.mrb[0].mxu0 %v1014
  %v1238 = vpop.f32.mrb[0].mxu0
  %v1239 = vadd.f32 %v669, %v1238
  %v1240 = vpop.f32.mrb[0].mxu0
  %v1241 = vpop.f32.mrb[0].mxu0
  %v1242 = vadd.f32 %v674, %v1241
  %v1243 = vpop.f32.mrb[0].mxu0
  %1244 = vmatprep.mubr.bf16.mxu0 0
  %1245 = vmatmul.mubr.bf16.gmra.mrb[0].mxu0 %v1017
  %v1246 = vpop.f32.mrb[0].mxu0
  %v1247 = vadd.f32 %v679, %v1246
  %v1248 = vpop.f32.mrb[0].mxu0
  %v1249 = vpop.f32.mrb[0].mxu0
  %v1250 = vadd.f32 %v684, %v1249
  %v1251 = vpop.f32.mrb[0].mxu0
  %1252 = vmatprep.mubr.bf16.mxu0 0
  %1253 = vmatmul.mubr.bf16.gmra.mrb[0].mxu0 %v1020
  %v1254 = vpop.f32.mrb[0].mxu0
  %v1255 = vadd.f32 %v689, %v1254
  %v1256 = vpop.f32.mrb[0].mxu0
  %v1257 = vpop.f32.mrb[0].mxu0
  %v1258 = vadd.f32 %v694, %v1257
  %v1259 = vpop.f32.mrb[0].mxu0
  %1260 = vmatprep.mubr.bf16.mxu0 0
  %1261 = vmatmul.mubr.bf16.gmra.mrb[0].mxu0 %v1023
  %v1262 = vpop.f32.mrb[0].mxu0
  %v1263 = vadd.f32 %v699, %v1262
  %v1264 = vpop.f32.mrb[0].mxu0
  %v1265 = vpop.f32.mrb[0].mxu0
  %v1266 = vadd.f32 %v704, %v1265
  %v1267 = vpop.f32.mrb[0].mxu0
  %1268 = vmatprep.mubr.bf16.mxu0 0
  %1269 = vmatmul.mubr.bf16.gmra.mrb[0].mxu0 %v1026
  %v1270 = vpop.f32.mrb[0].mxu0
  %v1271 = vadd.f32 %v709, %v1270
  %v1272 = vpop.f32.mrb[0].mxu0
  %v1273 = vpop.f32.mrb[0].mxu0
  %v1274 = vadd.f32 %v714, %v1273
  %v1275 = vpop.f32.mrb[0].mxu0
  %1276 = vmatprep.mubr.bf16.mxu0 0
  %1277 = vmatmul.mubr.bf16.gmra.mrb[0].mxu0 %v1029
  %v1278 = vpop.f32.mrb[0].mxu0
  %v1279 = vadd.f32 %v719, %v1278
  %v1280 = vpop.f32.mrb[0].mxu0
  %v1281 = vpop.f32.mrb[0].mxu0
  %v1282 = vadd.f32 %v724, %v1281
  %v1283 = vpop.f32.mrb[0].mxu0
  %1284 = vmatprep.mubr.bf16.mxu0 0
  %1285 = vmatmul.mubr.bf16.gmra.mrb[0].mxu0 %v1032
  %v1286 = vpop.f32.mrb[0].mxu0
  %v1287 = vadd.f32 %v729, %v1286
  %v1288 = vpop.f32.mrb[0].mxu0
  %v1289 = vpop.f32.mrb[0].mxu0
  %v1290 = vadd.f32 %v734, %v1289
  %v1291 = vpop.f32.mrb[0].mxu0
  %1292 = vmatprep.mubr.bf16.mxu0 0
  %1293 = vmatmul.mubr.bf16.gmra.mrb[0].mxu0 %v1035
  %v1294 = vpop.f32.mrb[0].mxu0
  %v1295 = vadd.f32 %v739, %v1294
  %v1296 = vpop.f32.mrb[0].mxu0
  %v1297 = vpop.f32.mrb[0].mxu0
  %v1298 = vadd.f32 %v744, %v1297
  %v1299 = vpop.f32.mrb[0].mxu0
  %1300 = vmatprep.mubr.bf16.mxu0 0
  %1301 = vmatmul.mubr.bf16.gmra.mrb[0].mxu0 %v1038
  %v1302 = vpop.f32.mrb[0].mxu0
  %v1303 = vadd.f32 %v749, %v1302
  %v1304 = vpop.f32.mrb[0].mxu0
  %v1305 = vpop.f32.mrb[0].mxu0
  %v1306 = vadd.f32 %v754, %v1305
  %v1307 = vpop.f32.mrb[0].mxu0
  %1308 = vmatprep.mubr.bf16.mxu0 0
  %1309 = vmatmul.mubr.bf16.gmra.mrb[0].mxu0 %v1041
  %v1310 = vpop.f32.mrb[0].mxu0
  %v1311 = vadd.f32 %v759, %v1310
  %v1312 = vpop.f32.mrb[0].mxu0
  %v1313 = vpop.f32.mrb[0].mxu0
  %v1314 = vadd.f32 %v764, %v1313
  %v1315 = vpop.f32.mrb[0].mxu0
  %1316 = vmatprep.mubr.bf16.mxu0 0
  %1317 = vmatmul.mubr.bf16.gmra.mrb[0].mxu0 %v1044
  %v1318 = vpop.f32.mrb[0].mxu0
  %v1319 = vadd.f32 %v769, %v1318
  %v1320 = vpop.f32.mrb[0].mxu0
  %v1321 = vpop.f32.mrb[0].mxu0
  %v1322 = vadd.f32 %v774, %v1321
  %v1323 = vpop.f32.mrb[0].mxu0
  %1324 = vmatprep.mubr.bf16.mxu0 0
  %1325 = vmatmul.mubr.bf16.gmra.mrb[0].mxu0 %v1047
  %v1326 = vpop.f32.mrb[0].mxu0
  %v1327 = vadd.f32 %v779, %v1326
  %v1328 = vpop.f32.mrb[0].mxu0
  %v1329 = vpop.f32.mrb[0].mxu0
  %v1330 = vadd.f32 %v784, %v1329
  %v1331 = vpop.f32.mrb[0].mxu0
  %1332 = vmatprep.mubr.bf16.mxu0 0
  %1333 = vmatmul.mubr.bf16.gmra.mrb[0].mxu0 %v1050
  %v1334 = vpop.f32.mrb[0].mxu0
  %v1335 = vadd.f32 %v789, %v1334
  %v1336 = vpop.f32.mrb[0].mxu0
  %v1337 = vpop.f32.mrb[0].mxu0
  %v1338 = vadd.f32 %v794, %v1337
  %v1339 = vpop.f32.mrb[0].mxu0
  %1340 = vdwg.mxu0
  %v1341 = vmax.f32 %v1087, 0.0
  %v1342 = vmax.f32 %v1090, 0.0
  %v1343 = vmax.f32 %v1095, 0.0
  %v1344 = vmax.f32 %v1098, 0.0
  %v1345 = vmax.f32 %v1103, 0.0
  %v1346 = vmax.f32 %v1106, 0.0
  %v1347 = vmax.f32 %v1111, 0.0
  %v1348 = vmax.f32 %v1114, 0.0
  %v1349 = vmax.f32 %v1119, 0.0
  %v1350 = vmax.f32 %v1122, 0.0
  %v1351 = vmax.f32 %v1127, 0.0
  %v1352 = vmax.f32 %v1130, 0.0
  %v1353 = vmax.f32 %v1135, 0.0
  %v1354 = vmax.f32 %v1138, 0.0
  %v1355 = vmax.f32 %v1143, 0.0
  %v1356 = vmax.f32 %v1146, 0.0
  %v1357 = vmax.f32 %v1151, 0.0
  %v1358 = vmax.f32 %v1154, 0.0
  %v1359 = vmax.f32 %v1159, 0.0
  %v1360 = vmax.f32 %v1162, 0.0
  %v1361 = vmax.f32 %v1167, 0.0
  %v1362 = vmax.f32 %v1170, 0.0
  %v1363 = vmax.f32 %v1175, 0.0
  %v1364 = vmax.f32 %v1178, 0.0
  %v1365 = vmax.f32 %v1183, 0.0
  %v1366 = vmax.f32 %v1186, 0.0
  %v1367 = vmax.f32 %v1191, 0.0
  %v1368 = vmax.f32 %v1194, 0.0
  %v1369 = vmax.f32 %v1199, 0.0
  %v1370 = vmax.f32 %v1202, 0.0
  %v1371 = vmax.f32 %v1207, 0.0
  %v1372 = vmax.f32 %v1210, 0.0
  %v1373 = vmax.f32 %v1215, 0.0
  %v1374 = vmax.f32 %v1218, 0.0
  %v1375 = vmax.f32 %v1223, 0.0
  %v1376 = vmax.f32 %v1226, 0.0
  %v1377 = vmax.f32 %v1231, 0.0
  %v1378 = vmax.f32 %v1234, 0.0
  %v1379 = vmax.f32 %v1239, 0.0
  %v1380 = vmax.f32 %v1242, 0.0
  %v1381 = vmax.f32 %v1247, 0.0
  %v1382 = vmax.f32 %v1250, 0.0
  %v1383 = vmax.f32 %v1255, 0.0
  %v1384 = vmax.f32 %v1258, 0.0
  %v1385 = vmax.f32 %v1263, 0.0
  %v1386 = vmax.f32 %v1266, 0.0
  %v1387 = vmax.f32 %v1271, 0.0
  %v1388 = vmax.f32 %v1274, 0.0
  %v1389 = vmax.f32 %v1279, 0.0
  %v1390 = vmax.f32 %v1282, 0.0
  %v1391 = vmax.f32 %v1287, 0.0
  %v1392 = vmax.f32 %v1290, 0.0
  %v1393 = vmax.f32 %v1295, 0.0
  %v1394 = vmax.f32 %v1298, 0.0
  %v1395 = vmax.f32 %v1303, 0.0
  %v1396 = vmax.f32 %v1306, 0.0
  %v1397 = vmax.f32 %v1311, 0.0
  %v1398 = vmax.f32 %v1314, 0.0
  %v1399 = vmax.f32 %v1319, 0.0
  %v1400 = vmax.f32 %v1322, 0.0
  %v1401 = vmax.f32 %v1327, 0.0
  %v1402 = vmax.f32 %v1330, 0.0
  %v1403 = vmax.f32 %v1335, 0.0
  %v1404 = vmax.f32 %v1338, 0.0
  %v1405 = vld [vmem:[%s7] sm:$0xff]
  %v1406 = vld [vmem:[%s7 + $0x8] sm:$0xff]
  %v1407 = vld [vmem:[%s7 + $0x10] sm:$0xff]
  %v1408 = vld [vmem:[%s7 + $0x18] sm:$0xff]
  %v1409 = vld [vmem:[%s7 + $0x20] sm:$0xff]
  %v1410 = vld [vmem:[%s7 + $0x28] sm:$0xff]
  %v1411 = vld [vmem:[%s7 + $0x30] sm:$0xff]
  %v1412 = vld [vmem:[%s7 + $0x38] sm:$0xff]
  %v1413 = vld [vmem:[%s7 + $0x40] sm:$0xff]
  %v1414 = vld [vmem:[%s7 + $0x48] sm:$0xff]
  %v1415 = vld [vmem:[%s7 + $0x50] sm:$0xff]
  %v1416 = vld [vmem:[%s7 + $0x58] sm:$0xff]
  %v1417 = vld [vmem:[%s7 + $0x60] sm:$0xff]
  %v1418 = vld [vmem:[%s7 + $0x68] sm:$0xff]
  %v1419 = vld [vmem:[%s7 + $0x70] sm:$0xff]
  %v1420 = vld [vmem:[%s7 + $0x78] sm:$0xff]
  %v1421 = vld [vmem:[%s7 + $0x80] sm:$0xff]
  %v1422 = vld [vmem:[%s7 + $0x88] sm:$0xff]
  %v1423 = vld [vmem:[%s7 + $0x90] sm:$0xff]
  %v1424 = vld [vmem:[%s7 + $0x98] sm:$0xff]
  %v1425 = vld [vmem:[%s7 + $0xa0] sm:$0xff]
  %v1426 = vld [vmem:[%s7 + $0xa8] sm:$0xff]
  %v1427 = vld [vmem:[%s7 + $0xb0] sm:$0xff]
  %v1428 = vld [vmem:[%s7 + $0xb8] sm:$0xff]
  %v1429 = vld [vmem:[%s7 + $0xc0] sm:$0xff]
  %v1430 = vld [vmem:[%s7 + $0xc8] sm:$0xff]
  %v1431 = vld [vmem:[%s7 + $0xd0] sm:$0xff]
  %v1432 = vld [vmem:[%s7 + $0xd8] sm:$0xff]
  %v1433 = vld [vmem:[%s7 + $0xe0] sm:$0xff]
  %v1434 = vld [vmem:[%s7 + $0xe8] sm:$0xff]
  %v1435 = vld [vmem:[%s7 + $0xf0] sm:$0xff]
  %v1436 = vld [vmem:[%s7 + $0xf8] sm:$0xff]
  %v1437 = vld [vmem:[%s7 + $0x100] sm:$0xff]
  %v1438 = vld [vmem:[%s7 + $0x108] sm:$0xff]
  %v1439 = vld [vmem:[%s7 + $0x110] sm:$0xff]
  %v1440 = vld [vmem:[%s7 + $0x118] sm:$0xff]
  %v1441 = vld [vmem:[%s7 + $0x120] sm:$0xff]
  %v1442 = vld [vmem:[%s7 + $0x128] sm:$0xff]
  %v1443 = vld [vmem:[%s7 + $0x130] sm:$0xff]
  %v1444 = vld [vmem:[%s7 + $0x138] sm:$0xff]
  %v1445 = vld [vmem:[%s7 + $0x140] sm:$0xff]
  %v1446 = vld [vmem:[%s7 + $0x148] sm:$0xff]
  %v1447 = vld [vmem:[%s7 + $0x150] sm:$0xff]
  %v1448 = vld [vmem:[%s7 + $0x158] sm:$0xff]
  %v1449 = vld [vmem:[%s7 + $0x160] sm:$0xff]
  %v1450 = vld [vmem:[%s7 + $0x168] sm:$0xff]
  %v1451 = vld [vmem:[%s7 + $0x170] sm:$0xff]
  %v1452 = vld [vmem:[%s7 + $0x178] sm:$0xff]
  %v1453 = vld [vmem:[%s7 + $0x180] sm:$0xff]
  %v1454 = vld [vmem:[%s7 + $0x188] sm:$0xff]
  %v1455 = vld [vmem:[%s7 + $0x190] sm:$0xff]
  %v1456 = vld [vmem:[%s7 + $0x198] sm:$0xff]
  %v1457 = vld [vmem:[%s7 + $0x1a0] sm:$0xff]
  %v1458 = vld [vmem:[%s7 + $0x1a8] sm:$0xff]
  %v1459 = vld [vmem:[%s7 + $0x1b0] sm:$0xff]
  %v1460 = vld [vmem:[%s7 + $0x1b8] sm:$0xff]
  %v1461 = vld [vmem:[%s7 + $0x1c0] sm:$0xff]
  %v1462 = vld [vmem:[%s7 + $0x1c8] sm:$0xff]
  %v1463 = vld [vmem:[%s7 + $0x1d0] sm:$0xff]
  %v1464 = vld [vmem:[%s7 + $0x1d8] sm:$0xff]
  %v1465 = vld [vmem:[%s7 + $0x1e0] sm:$0xff]
  %v1466 = vld [vmem:[%s7 + $0x1e8] sm:$0xff]
  %v1467 = vld [vmem:[%s7 + $0x1f0] sm:$0xff]
  %v1468 = vld [vmem:[%s7 + $0x1f8] sm:$0xff]
  %v1469 = vpack.c.bf16 %v1342, %v1341
  %v1470 = vpack.c.bf16 %v1344, %v1343
  %v1471 = vpack.c.bf16 %v1346, %v1345
  %v1472 = vpack.c.bf16 %v1348, %v1347
  %v1473 = vpack.c.bf16 %v1350, %v1349
  %v1474 = vpack.c.bf16 %v1352, %v1351
  %v1475 = vpack.c.bf16 %v1354, %v1353
  %v1476 = vpack.c.bf16 %v1356, %v1355
  %v1477 = vpack.c.bf16 %v1358, %v1357
  %v1478 = vpack.c.bf16 %v1360, %v1359
  %v1479 = vpack.c.bf16 %v1362, %v1361
  %v1480 = vpack.c.bf16 %v1364, %v1363
  %v1481 = vpack.c.bf16 %v1366, %v1365
  %v1482 = vpack.c.bf16 %v1368, %v1367
  %v1483 = vpack.c.bf16 %v1370, %v1369
  %v1484 = vpack.c.bf16 %v1372, %v1371
  %v1485 = vpack.c.bf16 %v1374, %v1373
  %v1486 = vpack.c.bf16 %v1376, %v1375
  %v1487 = vpack.c.bf16 %v1378, %v1377
  %v1488 = vpack.c.bf16 %v1380, %v1379
  %v1489 = vpack.c.bf16 %v1382, %v1381
  %v1490 = vpack.c.bf16 %v1384, %v1383
  %v1491 = vpack.c.bf16 %v1386, %v1385
  %v1492 = vpack.c.bf16 %v1388, %v1387
  %v1493 = vpack.c.bf16 %v1390, %v1389
  %v1494 = vpack.c.bf16 %v1392, %v1391
  %v1495 = vpack.c.bf16 %v1394, %v1393
  %v1496 = vpack.c.bf16 %v1396, %v1395
  %v1497 = vpack.c.bf16 %v1398, %v1397
  %v1498 = vpack.c.bf16 %v1400, %v1399
  %v1499 = vpack.c.bf16 %v1402, %v1401
  %v1500 = vpack.c.bf16 %v1404, %v1403
  %v1501 = vld [vmem:[%s8] sm:$0xff]
  %v1502 = vld [vmem:[%s8 + $0x8] sm:$0xff]
  %v1503 = vld [vmem:[%s8 + $0x10] sm:$0xff]
  %v1504 = vld [vmem:[%s8 + $0x18] sm:$0xff]
  %v1505 = vld [vmem:[%s8 + $0x20] sm:$0xff]
  %v1506 = vld [vmem:[%s8 + $0x28] sm:$0xff]
  %v1507 = vld [vmem:[%s8 + $0x30] sm:$0xff]
  %v1508 = vld [vmem:[%s8 + $0x38] sm:$0xff]
  %v1509 = vld [vmem:[%s8 + $0x40] sm:$0xff]
  %v1510 = vld [vmem:[%s8 + $0x48] sm:$0xff]
  %v1511 = vld [vmem:[%s8 + $0x50] sm:$0xff]
  %v1512 = vld [vmem:[%s8 + $0x58] sm:$0xff]
  %v1513 = vld [vmem:[%s8 + $0x60] sm:$0xff]
  %v1514 = vld [vmem:[%s8 + $0x68] sm:$0xff]
  %v1515 = vld [vmem:[%s8 + $0x70] sm:$0xff]
  %v1516 = vld [vmem:[%s8 + $0x78] sm:$0xff]
  %v1517 = vld [vmem:[%s8 + $0x80] sm:$0xff]
  %v1518 = vld [vmem:[%s8 + $0x88] sm:$0xff]
  %v1519 = vld [vmem:[%s8 + $0x90] sm:$0xff]
  %v1520 = vld [vmem:[%s8 + $0x98] sm:$0xff]
  %v1521 = vld [vmem:[%s8 + $0xa0] sm:$0xff]
  %v1522 = vld [vmem:[%s8 + $0xa8] sm:$0xff]
  %v1523 = vld [vmem:[%s8 + $0xb0] sm:$0xff]
  %v1524 = vld [vmem:[%s8 + $0xb8] sm:$0xff]
  %v1525 = vld [vmem:[%s8 + $0xc0] sm:$0xff]
  %v1526 = vld [vmem:[%s8 + $0xc8] sm:$0xff]
  %v1527 = vld [vmem:[%s8 + $0xd0] sm:$0xff]
  %v1528 = vld [vmem:[%s8 + $0xd8] sm:$0xff]
  %v1529 = vld [vmem:[%s8 + $0xe0] sm:$0xff]
  %v1530 = vld [vmem:[%s8 + $0xe8] sm:$0xff]
  %v1531 = vld [vmem:[%s8 + $0xf0] sm:$0xff]
  %v1532 = vld [vmem:[%s8 + $0xf8] sm:$0xff]
  %1534 = vset.pattern.permute.xlu0 0
  %1535 = vperm.xlu0 %1534, %v1501
  %v1536 = vpop.permute.xlu0 %1535
  %1539 = vset.pattern.permute.xlu0 0
  %1540 = vperm.xlu0 %1539, %v1502
  %v1541 = vpop.permute.xlu0 %1540
  %1544 = vset.pattern.permute.xlu0 0
  %1545 = vperm.xlu0 %1544, %v1503
  %v1546 = vpop.permute.xlu0 %1545
  %1549 = vset.pattern.permute.xlu0 0
  %1550 = vperm.xlu0 %1549, %v1504
  %v1551 = vpop.permute.xlu0 %1550
  %1554 = vset.pattern.permute.xlu0 0
  %1555 = vperm.xlu0 %1554, %v1505
  %v1556 = vpop.permute.xlu0 %1555
  %1559 = vset.pattern.permute.xlu0 0
  %1560 = vperm.xlu0 %1559, %v1506
  %v1561 = vpop.permute.xlu0 %1560
  %1564 = vset.pattern.permute.xlu0 0
  %1565 = vperm.xlu0 %1564, %v1507
  %v1566 = vpop.permute.xlu0 %1565
  %1569 = vset.pattern.permute.xlu0 0
  %1570 = vperm.xlu0 %1569, %v1508
  %v1571 = vpop.permute.xlu0 %1570
  %1574 = vset.pattern.permute.xlu0 0
  %1575 = vperm.xlu0 %1574, %v1509
  %v1576 = vpop.permute.xlu0 %1575
  %1579 = vset.pattern.permute.xlu0 0
  %1580 = vperm.xlu0 %1579, %v1510
  %v1581 = vpop.permute.xlu0 %1580
  %1584 = vset.pattern.permute.xlu0 0
  %1585 = vperm.xlu0 %1584, %v1511
  %v1586 = vpop.permute.xlu0 %1585
  %1589 = vset.pattern.permute.xlu0 0
  %1590 = vperm.xlu0 %1589, %v1512
  %v1591 = vpop.permute.xlu0 %1590
  %1594 = vset.pattern.permute.xlu0 0
  %1595 = vperm.xlu0 %1594, %v1513
  %v1596 = vpop.permute.xlu0 %1595
  %1599 = vset.pattern.permute.xlu0 0
  %1600 = vperm.xlu0 %1599, %v1514
  %v1601 = vpop.permute.xlu0 %1600
  %1604 = vset.pattern.permute.xlu0 0
  %1605 = vperm.xlu0 %1604, %v1515
  %v1606 = vpop.permute.xlu0 %1605
  %1609 = vset.pattern.permute.xlu0 0
  %1610 = vperm.xlu0 %1609, %v1516
  %v1611 = vpop.permute.xlu0 %1610
  %1614 = vset.pattern.permute.xlu0 0
  %1615 = vperm.xlu0 %1614, %v1517
  %v1616 = vpop.permute.xlu0 %1615
  %1619 = vset.pattern.permute.xlu0 0
  %1620 = vperm.xlu0 %1619, %v1518
  %v1621 = vpop.permute.xlu0 %1620
  %1624 = vset.pattern.permute.xlu0 0
  %1625 = vperm.xlu0 %1624, %v1519
  %v1626 = vpop.permute.xlu0 %1625
  %1629 = vset.pattern.permute.xlu0 0
  %1630 = vperm.xlu0 %1629, %v1520
  %v1631 = vpop.permute.xlu0 %1630
  %1634 = vset.pattern.permute.xlu0 0
  %1635 = vperm.xlu0 %1634, %v1521
  %v1636 = vpop.permute.xlu0 %1635
  %1639 = vset.pattern.permute.xlu0 0
  %1640 = vperm.xlu0 %1639, %v1522
  %v1641 = vpop.permute.xlu0 %1640
  %1644 = vset.pattern.permute.xlu0 0
  %1645 = vperm.xlu0 %1644, %v1523
  %v1646 = vpop.permute.xlu0 %1645
  %1649 = vset.pattern.permute.xlu0 0
  %1650 = vperm.xlu0 %1649, %v1524
  %v1651 = vpop.permute.xlu0 %1650
  %1654 = vset.pattern.permute.xlu0 0
  %1655 = vperm.xlu0 %1654, %v1525
  %v1656 = vpop.permute.xlu0 %1655
  %1659 = vset.pattern.permute.xlu0 0
  %1660 = vperm.xlu0 %1659, %v1526
  %v1661 = vpop.permute.xlu0 %1660
  %1664 = vset.pattern.permute.xlu0 0
  %1665 = vperm.xlu0 %1664, %v1527
  %v1666 = vpop.permute.xlu0 %1665
  %1669 = vset.pattern.permute.xlu0 0
  %1670 = vperm.xlu0 %1669, %v1528
  %v1671 = vpop.permute.xlu0 %1670
  %1674 = vset.pattern.permute.xlu0 0
  %1675 = vperm.xlu0 %1674, %v1529
  %v1676 = vpop.permute.xlu0 %1675
  %1679 = vset.pattern.permute.xlu0 0
  %1680 = vperm.xlu0 %1679, %v1530
  %v1681 = vpop.permute.xlu0 %1680
  %1684 = vset.pattern.permute.xlu0 0
  %1685 = vperm.xlu0 %1684, %v1531
  %v1686 = vpop.permute.xlu0 %1685
  %1689 = vset.pattern.permute.xlu0 0
  %1690 = vperm.xlu0 %1689, %v1532
  %v1691 = vpop.permute.xlu0 %1690
  %v1757 = vunpack.c.l.b16 %v1405
  %v1758 = vunpack.c.h.b16 %v1405
  %v1759 = vunpack.c.l.b16 %v1406
  %v1760 = vunpack.c.h.b16 %v1406
  %v1761 = vunpack.c.l.b16 %v1407
  %v1762 = vunpack.c.h.b16 %v1407
  %v1763 = vunpack.c.l.b16 %v1408
  %v1764 = vunpack.c.h.b16 %v1408
  %v1765 = vunpack.c.l.b16 %v1409
  %v1766 = vunpack.c.h.b16 %v1409
  %v1767 = vunpack.c.l.b16 %v1410
  %v1768 = vunpack.c.h.b16 %v1410
  %v1769 = vunpack.c.l.b16 %v1411
  %v1770 = vunpack.c.h.b16 %v1411
  %v1771 = vunpack.c.l.b16 %v1412
  %v1772 = vunpack.c.h.b16 %v1412
  %v1773 = vunpack.c.l.b16 %v1413
  %v1774 = vunpack.c.h.b16 %v1413
  %v1775 = vunpack.c.l.b16 %v1414
  %v1776 = vunpack.c.h.b16 %v1414
  %v1777 = vunpack.c.l.b16 %v1415
  %v1778 = vunpack.c.h.b16 %v1415
  %v1779 = vunpack.c.l.b16 %v1416
  %v1780 = vunpack.c.h.b16 %v1416
  %v1781 = vunpack.c.l.b16 %v1417
  %v1782 = vunpack.c.h.b16 %v1417
  %v1783 = vunpack.c.l.b16 %v1418
  %v1784 = vunpack.c.h.b16 %v1418
  %v1785 = vunpack.c.l.b16 %v1419
  %v1786 = vunpack.c.h.b16 %v1419
  %v1787 = vunpack.c.l.b16 %v1420
  %v1788 = vunpack.c.h.b16 %v1420
  %v1789 = vunpack.c.l.b16 %v1421
  %v1790 = vunpack.c.h.b16 %v1421
  %v1791 = vunpack.c.l.b16 %v1422
  %v1792 = vunpack.c.h.b16 %v1422
  %v1793 = vunpack.c.l.b16 %v1423
  %v1794 = vunpack.c.h.b16 %v1423
  %v1795 = vunpack.c.l.b16 %v1424
  %v1796 = vunpack.c.h.b16 %v1424
  %v1797 = vunpack.c.l.b16 %v1425
  %v1798 = vunpack.c.h.b16 %v1425
  %v1799 = vunpack.c.l.b16 %v1426
  %v1800 = vunpack.c.h.b16 %v1426
  %v1801 = vunpack.c.l.b16 %v1427
  %v1802 = vunpack.c.h.b16 %v1427
  %v1803 = vunpack.c.l.b16 %v1428
  %v1804 = vunpack.c.h.b16 %v1428
  %v1805 = vunpack.c.l.b16 %v1429
  %v1806 = vunpack.c.h.b16 %v1429
  %v1807 = vunpack.c.l.b16 %v1430
  %v1808 = vunpack.c.h.b16 %v1430
  %v1809 = vunpack.c.l.b16 %v1431
  %v1810 = vunpack.c.h.b16 %v1431
  %v1811 = vunpack.c.l.b16 %v1432
  %v1812 = vunpack.c.h.b16 %v1432
  %v1813 = vunpack.c.l.b16 %v1433
  %v1814 = vunpack.c.h.b16 %v1433
  %v1815 = vunpack.c.l.b16 %v1434
  %v1816 = vunpack.c.h.b16 %v1434
  %v1817 = vunpack.c.l.b16 %v1435
  %v1818 = vunpack.c.h.b16 %v1435
  %v1819 = vunpack.c.l.b16 %v1436
  %v1820 = vunpack.c.h.b16 %v1436
  %v1821 = vunpack.c.l.b16 %v1437
  %v1822 = vunpack.c.h.b16 %v1437
  %v1823 = vunpack.c.l.b16 %v1438
  %v1824 = vunpack.c.h.b16 %v1438
  %v1825 = vunpack.c.l.b16 %v1439
  %v1826 = vunpack.c.h.b16 %v1439
  %v1827 = vunpack.c.l.b16 %v1440
  %v1828 = vunpack.c.h.b16 %v1440
  %v1829 = vunpack.c.l.b16 %v1441
  %v1830 = vunpack.c.h.b16 %v1441
  %v1831 = vunpack.c.l.b16 %v1442
  %v1832 = vunpack.c.h.b16 %v1442
  %v1833 = vunpack.c.l.b16 %v1443
  %v1834 = vunpack.c.h.b16 %v1443
  %v1835 = vunpack.c.l.b16 %v1444
  %v1836 = vunpack.c.h.b16 %v1444
  %v1837 = vunpack.c.l.b16 %v1445
  %v1838 = vunpack.c.h.b16 %v1445
  %v1839 = vunpack.c.l.b16 %v1446
  %v1840 = vunpack.c.h.b16 %v1446
  %v1841 = vunpack.c.l.b16 %v1447
  %v1842 = vunpack.c.h.b16 %v1447
  %v1843 = vunpack.c.l.b16 %v1448
  %v1844 = vunpack.c.h.b16 %v1448
  %v1845 = vunpack.c.l.b16 %v1449
  %v1846 = vunpack.c.h.b16 %v1449
  %v1847 = vunpack.c.l.b16 %v1450
  %v1848 = vunpack.c.h.b16 %v1450
  %v1849 = vunpack.c.l.b16 %v1451
  %v1850 = vunpack.c.h.b16 %v1451
  %v1851 = vunpack.c.l.b16 %v1452
  %v1852 = vunpack.c.h.b16 %v1452
  %v1853 = vunpack.c.l.b16 %v1453
  %v1854 = vunpack.c.h.b16 %v1453
  %v1855 = vunpack.c.l.b16 %v1454
  %v1856 = vunpack.c.h.b16 %v1454
  %v1857 = vunpack.c.l.b16 %v1455
  %v1858 = vunpack.c.h.b16 %v1455
  %v1859 = vunpack.c.l.b16 %v1456
  %v1860 = vunpack.c.h.b16 %v1456
  %v1861 = vunpack.c.l.b16 %v1457
  %v1862 = vunpack.c.h.b16 %v1457
  %v1863 = vunpack.c.l.b16 %v1458
  %v1864 = vunpack.c.h.b16 %v1458
  %v1865 = vunpack.c.l.b16 %v1459
  %v1866 = vunpack.c.h.b16 %v1459
  %v1867 = vunpack.c.l.b16 %v1460
  %v1868 = vunpack.c.h.b16 %v1460
  %v1869 = vunpack.c.l.b16 %v1461
  %v1870 = vunpack.c.h.b16 %v1461
  %v1871 = vunpack.c.l.b16 %v1462
  %v1872 = vunpack.c.h.b16 %v1462
  %v1873 = vunpack.c.l.b16 %v1463
  %v1874 = vunpack.c.h.b16 %v1463
  %v1875 = vunpack.c.l.b16 %v1464
  %v1876 = vunpack.c.h.b16 %v1464
  %v1877 = vunpack.c.l.b16 %v1465
  %v1878 = vunpack.c.h.b16 %v1465
  %v1879 = vunpack.c.l.b16 %v1466
  %v1880 = vunpack.c.h.b16 %v1466
  %v1881 = vunpack.c.l.b16 %v1467
  %v1882 = vunpack.c.h.b16 %v1467
  %v1883 = vunpack.c.l.b16 %v1468
  %v1884 = vunpack.c.h.b16 %v1468
  %v1885 = vpack.c.b16 %v1761, %v1757
  %v1886 = vpack.c.b16 %v1762, %v1758
  %v1887 = vpack.c.b16 %v1763, %v1759
  %v1888 = vpack.c.b16 %v1764, %v1760
  %v1889 = vpack.c.b16 %v1769, %v1765
  %v1890 = vpack.c.b16 %v1770, %v1766
  %v1891 = vpack.c.b16 %v1771, %v1767
  %v1892 = vpack.c.b16 %v1772, %v1768
  %v1893 = vpack.c.b16 %v1777, %v1773
  %v1894 = vpack.c.b16 %v1778, %v1774
  %v1895 = vpack.c.b16 %v1779, %v1775
  %v1896 = vpack.c.b16 %v1780, %v1776
  %v1897 = vpack.c.b16 %v1785, %v1781
  %v1898 = vpack.c.b16 %v1786, %v1782
  %v1899 = vpack.c.b16 %v1787, %v1783
  %v1900 = vpack.c.b16 %v1788, %v1784
  %v1901 = vpack.c.b16 %v1793, %v1789
  %v1902 = vpack.c.b16 %v1794, %v1790
  %v1903 = vpack.c.b16 %v1795, %v1791
  %v1904 = vpack.c.b16 %v1796, %v1792
  %v1905 = vpack.c.b16 %v1801, %v1797
  %v1906 = vpack.c.b16 %v1802, %v1798
  %v1907 = vpack.c.b16 %v1803, %v1799
  %v1908 = vpack.c.b16 %v1804, %v1800
  %v1909 = vpack.c.b16 %v1809, %v1805
  %v1910 = vpack.c.b16 %v1810, %v1806
  %v1911 = vpack.c.b16 %v1811, %v1807
  %v1912 = vpack.c.b16 %v1812, %v1808
  %v1913 = vpack.c.b16 %v1817, %v1813
  %v1914 = vpack.c.b16 %v1818, %v1814
  %v1915 = vpack.c.b16 %v1819, %v1815
  %v1916 = vpack.c.b16 %v1820, %v1816
  %v1917 = vpack.c.b16 %v1825, %v1821
  %v1918 = vpack.c.b16 %v1826, %v1822
  %v1919 = vpack.c.b16 %v1827, %v1823
  %v1920 = vpack.c.b16 %v1828, %v1824
  %v1921 = vpack.c.b16 %v1833, %v1829
  %v1922 = vpack.c.b16 %v1834, %v1830
  %v1923 = vpack.c.b16 %v1835, %v1831
  %v1924 = vpack.c.b16 %v1836, %v1832
  %v1925 = vpack.c.b16 %v1841, %v1837
  %v1926 = vpack.c.b16 %v1842, %v1838
  %v1927 = vpack.c.b16 %v1843, %v1839
  %v1928 = vpack.c.b16 %v1844, %v1840
  %v1929 = vpack.c.b16 %v1849, %v1845
  %v1930 = vpack.c.b16 %v1850, %v1846
  %v1931 = vpack.c.b16 %v1851, %v1847
  %v1932 = vpack.c.b16 %v1852, %v1848
  %v1933 = vpack.c.b16 %v1857, %v1853
  %v1934 = vpack.c.b16 %v1858, %v1854
  %v1935 = vpack.c.b16 %v1859, %v1855
  %v1936 = vpack.c.b16 %v1860, %v1856
  %v1937 = vpack.c.b16 %v1865, %v1861
  %v1938 = vpack.c.b16 %v1866, %v1862
  %v1939 = vpack.c.b16 %v1867, %v1863
  %v1940 = vpack.c.b16 %v1868, %v1864
  %v1941 = vpack.c.b16 %v1873, %v1869
  %v1942 = vpack.c.b16 %v1874, %v1870
  %v1943 = vpack.c.b16 %v1875, %v1871
  %v1944 = vpack.c.b16 %v1876, %v1872
  %v1945 = vpack.c.b16 %v1881, %v1877
  %v1946 = vpack.c.b16 %v1882, %v1878
  %v1947 = vpack.c.b16 %v1883, %v1879
  %v1948 = vpack.c.b16 %v1884, %v1880
  %2013 = vmatprep.subr.bf16.mxu0 0
  %2014 = vmatpush1.bf16.msra.mxu0 %v1469
  %2015 = vmatprep.subr.bf16.mxu0 0
  %2016 = vmatpush1.bf16.msra.mxu0 %v1470
  %2017 = vmatprep.subr.bf16.mxu0 0
  %2018 = vmatpush1.bf16.msra.mxu0 %v1471
  %2019 = vmatprep.subr.bf16.mxu0 0
  %2020 = vmatpush1.bf16.msra.mxu0 %v1472
  %2021 = vmatprep.subr.bf16.mxu0 0
  %2022 = vmatpush1.bf16.msra.mxu0 %v1473
  %2023 = vmatprep.subr.bf16.mxu0 0
  %2024 = vmatpush1.bf16.msra.mxu0 %v1474
  %2025 = vmatprep.subr.bf16.mxu0 0
  %2026 = vmatpush1.bf16.msra.mxu0 %v1475
  %2027 = vmatprep.subr.bf16.mxu0 0
  %2028 = vmatpush1.bf16.msra.mxu0 %v1476
  %2029 = vmatprep.subr.bf16.mxu0 0
  %2030 = vmatpush1.bf16.msra.mxu0 %v1477
  %2031 = vmatprep.subr.bf16.mxu0 0
  %2032 = vmatpush1.bf16.msra.mxu0 %v1478
  %2033 = vmatprep.subr.bf16.mxu0 0
  %2034 = vmatpush1.bf16.msra.mxu0 %v1479
  %2035 = vmatprep.subr.bf16.mxu0 0
  %2036 = vmatpush1.bf16.msra.mxu0 %v1480
  %2037 = vmatprep.subr.bf16.mxu0 0
  %2038 = vmatpush1.bf16.msra.mxu0 %v1481
  %2039 = vmatprep.subr.bf16.mxu0 0
  %2040 = vmatpush1.bf16.msra.mxu0 %v1482
  %2041 = vmatprep.subr.bf16.mxu0 0
  %2042 = vmatpush1.bf16.msra.mxu0 %v1483
  %2043 = vmatprep.subr.bf16.mxu0 0
  %2044 = vmatpush1.bf16.msra.mxu0 %v1484
  %2045 = vmatprep.mubr.bf16.mxu0 %v1886
  %2046 = vmatmul.mubr.bf16.gmra.mrb[0].mxu0 %v1885
  %v2047 = vpop.f32.mrb[0].mxu0
  %v2048 = vadd.f32 %v1536, %v2047
  %v2049 = vpop.f32.mrb[0].mxu0
  %v2050 = vpop.f32.mrb[0].mxu0
  %v2051 = vadd.f32 %v1541, %v2050
  %v2052 = vpop.f32.mrb[0].mxu0
  %2053 = vmatprep.mubr.bf16.mxu0 %v1890
  %2054 = vmatmul.mubr.bf16.gmra.mrb[0].mxu0 %v1889
  %v2055 = vpop.f32.mrb[0].mxu0
  %v2056 = vadd.f32 %v1546, %v2055
  %v2057 = vpop.f32.mrb[0].mxu0
  %v2058 = vpop.f32.mrb[0].mxu0
  %v2059 = vadd.f32 %v1551, %v2058
  %v2060 = vpop.f32.mrb[0].mxu0
  %2061 = vmatprep.mubr.bf16.mxu0 %v1894
  %2062 = vmatmul.mubr.bf16.gmra.mrb[0].mxu0 %v1893
  %v2063 = vpop.f32.mrb[0].mxu0
  %v2064 = vadd.f32 %v1556, %v2063
  %v2065 = vpop.f32.mrb[0].mxu0
  %v2066 = vpop.f32.mrb[0].mxu0
  %v2067 = vadd.f32 %v1561, %v2066
  %v2068 = vpop.f32.mrb[0].mxu0
  %2069 = vmatprep.mubr.bf16.mxu0 %v1898
  %2070 = vmatmul.mubr.bf16.gmra.mrb[0].mxu0 %v1897
  %v2071 = vpop.f32.mrb[0].mxu0
  %v2072 = vadd.f32 %v1566, %v2071
  %v2073 = vpop.f32.mrb[0].mxu0
  %v2074 = vpop.f32.mrb[0].mxu0
  %v2075 = vadd.f32 %v1571, %v2074
  %v2076 = vpop.f32.mrb[0].mxu0
  %2077 = vmatprep.mubr.bf16.mxu0 %v1902
  %2078 = vmatmul.mubr.bf16.gmra.mrb[0].mxu0 %v1901
  %v2079 = vpop.f32.mrb[0].mxu0
  %v2080 = vadd.f32 %v1576, %v2079
  %v2081 = vpop.f32.mrb[0].mxu0
  %v2082 = vpop.f32.mrb[0].mxu0
  %v2083 = vadd.f32 %v1581, %v2082
  %v2084 = vpop.f32.mrb[0].mxu0
  %2085 = vmatprep.mubr.bf16.mxu0 %v1906
  %2086 = vmatmul.mubr.bf16.gmra.mrb[0].mxu0 %v1905
  %v2087 = vpop.f32.mrb[0].mxu0
  %v2088 = vadd.f32 %v1586, %v2087
  %v2089 = vpop.f32.mrb[0].mxu0
  %v2090 = vpop.f32.mrb[0].mxu0
  %v2091 = vadd.f32 %v1591, %v2090
  %v2092 = vpop.f32.mrb[0].mxu0
  %2093 = vmatprep.mubr.bf16.mxu0 %v1910
  %2094 = vmatmul.mubr.bf16.gmra.mrb[0].mxu0 %v1909
  %v2095 = vpop.f32.mrb[0].mxu0
  %v2096 = vadd.f32 %v1596, %v2095
  %v2097 = vpop.f32.mrb[0].mxu0
  %v2098 = vpop.f32.mrb[0].mxu0
  %v2099 = vadd.f32 %v1601, %v2098
  %v2100 = vpop.f32.mrb[0].mxu0
  %2101 = vmatprep.mubr.bf16.mxu0 %v1914
  %2102 = vmatmul.mubr.bf16.gmra.mrb[0].mxu0 %v1913
  %v2103 = vpop.f32.mrb[0].mxu0
  %v2104 = vadd.f32 %v1606, %v2103
  %v2105 = vpop.f32.mrb[0].mxu0
  %v2106 = vpop.f32.mrb[0].mxu0
  %v2107 = vadd.f32 %v1611, %v2106
  %v2108 = vpop.f32.mrb[0].mxu0
  %2109 = vmatprep.mubr.bf16.mxu0 %v1918
  %2110 = vmatmul.mubr.bf16.gmra.mrb[0].mxu0 %v1917
  %v2111 = vpop.f32.mrb[0].mxu0
  %v2112 = vadd.f32 %v1616, %v2111
  %v2113 = vpop.f32.mrb[0].mxu0
  %v2114 = vpop.f32.mrb[0].mxu0
  %v2115 = vadd.f32 %v1621, %v2114
  %v2116 = vpop.f32.mrb[0].mxu0
  %2117 = vmatprep.mubr.bf16.mxu0 %v1922
  %2118 = vmatmul.mubr.bf16.gmra.mrb[0].mxu0 %v1921
  %v2119 = vpop.f32.mrb[0].mxu0
  %v2120 = vadd.f32 %v1626, %v2119
  %v2121 = vpop.f32.mrb[0].mxu0
  %v2122 = vpop.f32.mrb[0].mxu0
  %v2123 = vadd.f32 %v1631, %v2122
  %v2124 = vpop.f32.mrb[0].mxu0
  %2125 = vmatprep.mubr.bf16.mxu0 %v1926
  %2126 = vmatmul.mubr.bf16.gmra.mrb[0].mxu0 %v1925
  %v2127 = vpop.f32.mrb[0].mxu0
  %v2128 = vadd.f32 %v1636, %v2127
  %v2129 = vpop.f32.mrb[0].mxu0
  %v2130 = vpop.f32.mrb[0].mxu0
  %v2131 = vadd.f32 %v1641, %v2130
  %v2132 = vpop.f32.mrb[0].mxu0
  %2133 = vmatprep.mubr.bf16.mxu0 %v1930
  %2134 = vmatmul.mubr.bf16.gmra.mrb[0].mxu0 %v1929
  %v2135 = vpop.f32.mrb[0].mxu0
  %v2136 = vadd.f32 %v1646, %v2135
  %v2137 = vpop.f32.mrb[0].mxu0
  %v2138 = vpop.f32.mrb[0].mxu0
  %v2139 = vadd.f32 %v1651, %v2138
  %v2140 = vpop.f32.mrb[0].mxu0
  %2141 = vmatprep.mubr.bf16.mxu0 %v1934
  %2142 = vmatmul.mubr.bf16.gmra.mrb[0].mxu0 %v1933
  %v2143 = vpop.f32.mrb[0].mxu0
  %v2144 = vadd.f32 %v1656, %v2143
  %v2145 = vpop.f32.mrb[0].mxu0
  %v2146 = vpop.f32.mrb[0].mxu0
  %v2147 = vadd.f32 %v1661, %v2146
  %v2148 = vpop.f32.mrb[0].mxu0
  %2149 = vmatprep.mubr.bf16.mxu0 %v1938
  %2150 = vmatmul.mubr.bf16.gmra.mrb[0].mxu0 %v1937
  %v2151 = vpop.f32.mrb[0].mxu0
  %v2152 = vadd.f32 %v1666, %v2151
  %v2153 = vpop.f32.mrb[0].mxu0
  %v2154 = vpop.f32.mrb[0].mxu0
  %v2155 = vadd.f32 %v1671, %v2154
  %v2156 = vpop.f32.mrb[0].mxu0
  %2157 = vmatprep.mubr.bf16.mxu0 %v1942
  %2158 = vmatmul.mubr.bf16.gmra.mrb[0].mxu0 %v1941
  %v2159 = vpop.f32.mrb[0].mxu0
  %v2160 = vadd.f32 %v1676, %v2159
  %v2161 = vpop.f32.mrb[0].mxu0
  %v2162 = vpop.f32.mrb[0].mxu0
  %v2163 = vadd.f32 %v1681, %v2162
  %v2164 = vpop.f32.mrb[0].mxu0
  %2165 = vmatprep.mubr.bf16.mxu0 %v1946
  %2166 = vmatmul.mubr.bf16.gmra.mrb[0].mxu0 %v1945
  %v2167 = vpop.f32.mrb[0].mxu0
  %v2168 = vadd.f32 %v1686, %v2167
  %v2169 = vpop.f32.mrb[0].mxu0
  %v2170 = vpop.f32.mrb[0].mxu0
  %v2171 = vadd.f32 %v1691, %v2170
  %v2172 = vpop.f32.mrb[0].mxu0
  %2173 = vdwg.mxu0
  %2174 = vmatprep.subr.bf16.mxu0 0
  %2175 = vmatpush1.bf16.msra.mxu0 %v1485
  %2176 = vmatprep.subr.bf16.mxu0 0
  %2177 = vmatpush1.bf16.msra.mxu0 %v1486
  %2178 = vmatprep.subr.bf16.mxu0 0
  %2179 = vmatpush1.bf16.msra.mxu0 %v1487
  %2180 = vmatprep.subr.bf16.mxu0 0
  %2181 = vmatpush1.bf16.msra.mxu0 %v1488
  %2182 = vmatprep.subr.bf16.mxu0 0
  %2183 = vmatpush1.bf16.msra.mxu0 %v1489
  %2184 = vmatprep.subr.bf16.mxu0 0
  %2185 = vmatpush1.bf16.msra.mxu0 %v1490
  %2186 = vmatprep.subr.bf16.mxu0 0
  %2187 = vmatpush1.bf16.msra.mxu0 %v1491
  %2188 = vmatprep.subr.bf16.mxu0 0
  %2189 = vmatpush1.bf16.msra.mxu0 %v1492
  %2190 = vmatprep.subr.bf16.mxu0 0
  %2191 = vmatpush1.bf16.msra.mxu0 %v1493
  %2192 = vmatprep.subr.bf16.mxu0 0
  %2193 = vmatpush1.bf16.msra.mxu0 %v1494
  %2194 = vmatprep.subr.bf16.mxu0 0
  %2195 = vmatpush1.bf16.msra.mxu0 %v1495
  %2196 = vmatprep.subr.bf16.mxu0 0
  %2197 = vmatpush1.bf16.msra.mxu0 %v1496
  %2198 = vmatprep.subr.bf16.mxu0 0
  %2199 = vmatpush1.bf16.msra.mxu0 %v1497
  %2200 = vmatprep.subr.bf16.mxu0 0
  %2201 = vmatpush1.bf16.msra.mxu0 %v1498
  %2202 = vmatprep.subr.bf16.mxu0 0
  %2203 = vmatpush1.bf16.msra.mxu0 %v1499
  %2204 = vmatprep.subr.bf16.mxu0 0
  %2205 = vmatpush1.bf16.msra.mxu0 %v1500
  %2206 = vmatprep.mubr.bf16.mxu0 %v1888
  %2207 = vmatmul.mubr.bf16.gmra.mrb[0].mxu0 %v1887
  %v2208 = vpop.f32.mrb[0].mxu0
  %v2209 = vadd.f32 %v2048, %v2208
  %v2210 = vpop.f32.mrb[0].mxu0
  %v2211 = vpop.f32.mrb[0].mxu0
  %v2212 = vadd.f32 %v2051, %v2211
  %v2213 = vpop.f32.mrb[0].mxu0
  %2214 = vmatprep.mubr.bf16.mxu0 %v1892
  %2215 = vmatmul.mubr.bf16.gmra.mrb[0].mxu0 %v1891
  %v2216 = vpop.f32.mrb[0].mxu0
  %v2217 = vadd.f32 %v2056, %v2216
  %v2218 = vpop.f32.mrb[0].mxu0
  %v2219 = vpop.f32.mrb[0].mxu0
  %v2220 = vadd.f32 %v2059, %v2219
  %v2221 = vpop.f32.mrb[0].mxu0
  %2222 = vmatprep.mubr.bf16.mxu0 %v1896
  %2223 = vmatmul.mubr.bf16.gmra.mrb[0].mxu0 %v1895
  %v2224 = vpop.f32.mrb[0].mxu0
  %v2225 = vadd.f32 %v2064, %v2224
  %v2226 = vpop.f32.mrb[0].mxu0
  %v2227 = vpop.f32.mrb[0].mxu0
  %v2228 = vadd.f32 %v2067, %v2227
  %v2229 = vpop.f32.mrb[0].mxu0
  %2230 = vmatprep.mubr.bf16.mxu0 %v1900
  %2231 = vmatmul.mubr.bf16.gmra.mrb[0].mxu0 %v1899
  %v2232 = vpop.f32.mrb[0].mxu0
  %v2233 = vadd.f32 %v2072, %v2232
  %v2234 = vpop.f32.mrb[0].mxu0
  %v2235 = vpop.f32.mrb[0].mxu0
  %v2236 = vadd.f32 %v2075, %v2235
  %v2237 = vpop.f32.mrb[0].mxu0
  %2238 = vmatprep.mubr.bf16.mxu0 %v1904
  %2239 = vmatmul.mubr.bf16.gmra.mrb[0].mxu0 %v1903
  %v2240 = vpop.f32.mrb[0].mxu0
  %v2241 = vadd.f32 %v2080, %v2240
  %v2242 = vpop.f32.mrb[0].mxu0
  %v2243 = vpop.f32.mrb[0].mxu0
  %v2244 = vadd.f32 %v2083, %v2243
  %v2245 = vpop.f32.mrb[0].mxu0
  %2246 = vmatprep.mubr.bf16.mxu0 %v1908
  %2247 = vmatmul.mubr.bf16.gmra.mrb[0].mxu0 %v1907
  %v2248 = vpop.f32.mrb[0].mxu0
  %v2249 = vadd.f32 %v2088, %v2248
  %v2250 = vpop.f32.mrb[0].mxu0
  %v2251 = vpop.f32.mrb[0].mxu0
  %v2252 = vadd.f32 %v2091, %v2251
  %v2253 = vpop.f32.mrb[0].mxu0
  %2254 = vmatprep.mubr.bf16.mxu0 %v1912
  %2255 = vmatmul.mubr.bf16.gmra.mrb[0].mxu0 %v1911
  %v2256 = vpop.f32.mrb[0].mxu0
  %v2257 = vadd.f32 %v2096, %v2256
  %v2258 = vpop.f32.mrb[0].mxu0
  %v2259 = vpop.f32.mrb[0].mxu0
  %v2260 = vadd.f32 %v2099, %v2259
  %v2261 = vpop.f32.mrb[0].mxu0
  %2262 = vmatprep.mubr.bf16.mxu0 %v1916
  %2263 = vmatmul.mubr.bf16.gmra.mrb[0].mxu0 %v1915
  %v2264 = vpop.f32.mrb[0].mxu0
  %v2265 = vadd.f32 %v2104, %v2264
  %v2266 = vpop.f32.mrb[0].mxu0
  %v2267 = vpop.f32.mrb[0].mxu0
  %v2268 = vadd.f32 %v2107, %v2267
  %v2269 = vpop.f32.mrb[0].mxu0
  %2270 = vmatprep.mubr.bf16.mxu0 %v1920
  %2271 = vmatmul.mubr.bf16.gmra.mrb[0].mxu0 %v1919
  %v2272 = vpop.f32.mrb[0].mxu0
  %v2273 = vadd.f32 %v2112, %v2272
  %v2274 = vpop.f32.mrb[0].mxu0
  %v2275 = vpop.f32.mrb[0].mxu0
  %v2276 = vadd.f32 %v2115, %v2275
  %v2277 = vpop.f32.mrb[0].mxu0
  %2278 = vmatprep.mubr.bf16.mxu0 %v1924
  %2279 = vmatmul.mubr.bf16.gmra.mrb[0].mxu0 %v1923
  %v2280 = vpop.f32.mrb[0].mxu0
  %v2281 = vadd.f32 %v2120, %v2280
  %v2282 = vpop.f32.mrb[0].mxu0
  %v2283 = vpop.f32.mrb[0].mxu0
  %v2284 = vadd.f32 %v2123, %v2283
  %v2285 = vpop.f32.mrb[0].mxu0
  %2286 = vmatprep.mubr.bf16.mxu0 %v1928
  %2287 = vmatmul.mubr.bf16.gmra.mrb[0].mxu0 %v1927
  %v2288 = vpop.f32.mrb[0].mxu0
  %v2289 = vadd.f32 %v2128, %v2288
  %v2290 = vpop.f32.mrb[0].mxu0
  %v2291 = vpop.f32.mrb[0].mxu0
  %v2292 = vadd.f32 %v2131, %v2291
  %v2293 = vpop.f32.mrb[0].mxu0
  %2294 = vmatprep.mubr.bf16.mxu0 %v1932
  %2295 = vmatmul.mubr.bf16.gmra.mrb[0].mxu0 %v1931
  %v2296 = vpop.f32.mrb[0].mxu0
  %v2297 = vadd.f32 %v2136, %v2296
  %v2298 = vpop.f32.mrb[0].mxu0
  %v2299 = vpop.f32.mrb[0].mxu0
  %v2300 = vadd.f32 %v2139, %v2299
  %v2301 = vpop.f32.mrb[0].mxu0
  %2302 = vmatprep.mubr.bf16.mxu0 %v1936
  %2303 = vmatmul.mubr.bf16.gmra.mrb[0].mxu0 %v1935
  %v2304 = vpop.f32.mrb[0].mxu0
  %v2305 = vadd.f32 %v2144, %v2304
  %v2306 = vpop.f32.mrb[0].mxu0
  %v2307 = vpop.f32.mrb[0].mxu0
  %v2308 = vadd.f32 %v2147, %v2307
  %v2309 = vpop.f32.mrb[0].mxu0
  %2310 = vmatprep.mubr.bf16.mxu0 %v1940
  %2311 = vmatmul.mubr.bf16.gmra.mrb[0].mxu0 %v1939
  %v2312 = vpop.f32.mrb[0].mxu0
  %v2313 = vadd.f32 %v2152, %v2312
  %v2314 = vpop.f32.mrb[0].mxu0
  %v2315 = vpop.f32.mrb[0].mxu0
  %v2316 = vadd.f32 %v2155, %v2315
  %v2317 = vpop.f32.mrb[0].mxu0
  %2318 = vmatprep.mubr.bf16.mxu0 %v1944
  %2319 = vmatmul.mubr.bf16.gmra.mrb[0].mxu0 %v1943
  %v2320 = vpop.f32.mrb[0].mxu0
  %v2321 = vadd.f32 %v2160, %v2320
  %v2322 = vpop.f32.mrb[0].mxu0
  %v2323 = vpop.f32.mrb[0].mxu0
  %v2324 = vadd.f32 %v2163, %v2323
  %v2325 = vpop.f32.mrb[0].mxu0
  %2326 = vmatprep.mubr.bf16.mxu0 %v1948
  %2327 = vmatmul.mubr.bf16.gmra.mrb[0].mxu0 %v1947
  %v2328 = vpop.f32.mrb[0].mxu0
  %v2329 = vadd.f32 %v2168, %v2328
  %v2330 = vpop.f32.mrb[0].mxu0
  %v2331 = vpop.f32.mrb[0].mxu0
  %v2332 = vadd.f32 %v2171, %v2331
  %v2333 = vpop.f32.mrb[0].mxu0
  %2334 = vdwg.mxu0
  %v2335 = vmax.f32 %v2209, 0.0
  %v2336 = vmax.f32 %v2212, 0.0
  %v2337 = vmax.f32 %v2217, 0.0
  %v2338 = vmax.f32 %v2220, 0.0
  %v2339 = vmax.f32 %v2225, 0.0
  %v2340 = vmax.f32 %v2228, 0.0
  %v2341 = vmax.f32 %v2233, 0.0
  %v2342 = vmax.f32 %v2236, 0.0
  %v2343 = vmax.f32 %v2241, 0.0
  %v2344 = vmax.f32 %v2244, 0.0
  %v2345 = vmax.f32 %v2249, 0.0
  %v2346 = vmax.f32 %v2252, 0.0
  %v2347 = vmax.f32 %v2257, 0.0
  %v2348 = vmax.f32 %v2260, 0.0
  %v2349 = vmax.f32 %v2265, 0.0
  %v2350 = vmax.f32 %v2268, 0.0
  %v2351 = vmax.f32 %v2273, 0.0
  %v2352 = vmax.f32 %v2276, 0.0
  %v2353 = vmax.f32 %v2281, 0.0
  %v2354 = vmax.f32 %v2284, 0.0
  %v2355 = vmax.f32 %v2289, 0.0
  %v2356 = vmax.f32 %v2292, 0.0
  %v2357 = vmax.f32 %v2297, 0.0
  %v2358 = vmax.f32 %v2300, 0.0
  %v2359 = vmax.f32 %v2305, 0.0
  %v2360 = vmax.f32 %v2308, 0.0
  %v2361 = vmax.f32 %v2313, 0.0
  %v2362 = vmax.f32 %v2316, 0.0
  %v2363 = vmax.f32 %v2321, 0.0
  %v2364 = vmax.f32 %v2324, 0.0
  %v2365 = vmax.f32 %v2329, 0.0
  %v2366 = vmax.f32 %v2332, 0.0
  %v2367 = vld [vmem:[%s9] sm:$0xff]
  %v2368 = vld [vmem:[%s9 + $0x8] sm:$0xff]
  %v2369 = vpack.c.bf16 %v2336, %v2335
  %v2370 = vpack.c.bf16 %v2338, %v2337
  %v2371 = vpack.c.bf16 %v2340, %v2339
  %v2372 = vpack.c.bf16 %v2342, %v2341
  %v2373 = vpack.c.bf16 %v2344, %v2343
  %v2374 = vpack.c.bf16 %v2346, %v2345
  %v2375 = vpack.c.bf16 %v2348, %v2347
  %v2376 = vpack.c.bf16 %v2350, %v2349
  %v2377 = vpack.c.bf16 %v2352, %v2351
  %v2378 = vpack.c.bf16 %v2354, %v2353
  %v2379 = vpack.c.bf16 %v2356, %v2355
  %v2380 = vpack.c.bf16 %v2358, %v2357
  %v2381 = vpack.c.bf16 %v2360, %v2359
  %v2382 = vpack.c.bf16 %v2362, %v2361
  %v2383 = vpack.c.bf16 %v2364, %v2363
  %v2384 = vpack.c.bf16 %v2366, %v2365
  %v2385 = vld [vmem:[%s10] sm:$0xff]
  %v2386 = vld [vmem:[%s10 + $0x8] sm:$0xff]
  %2388 = vset.pattern.permute.xlu0 0
  %2389 = vperm.xlu0 %2388, %v2385
  %v2390 = vpop.permute.xlu0 %2389
  %2393 = vset.pattern.permute.xlu0 0
  %2394 = vperm.xlu0 %2393, %v2386
  %v2395 = vpop.permute.xlu0 %2394
  %v2399 = vunpack.c.l.b16 %v2367
  %v2400 = vunpack.c.h.b16 %v2367
  %v2401 = vunpack.c.l.b16 %v2368
  %v2402 = vunpack.c.h.b16 %v2368
  %v2403 = vpack.c.b16 %v2401, %v2399
  %v2404 = vpack.c.b16 %v2402, %v2400
  %2407 = vmatprep.subr.bf16.mxu0 0
  %2408 = vmatpush1.bf16.msra.mxu0 %v2369
  %2409 = vmatprep.subr.bf16.mxu0 0
  %2410 = vmatpush1.bf16.msra.mxu0 %v2370
  %2411 = vmatprep.subr.bf16.mxu0 0
  %2412 = vmatpush1.bf16.msra.mxu0 %v2371
  %2413 = vmatprep.subr.bf16.mxu0 0
  %2414 = vmatpush1.bf16.msra.mxu0 %v2372
  %2415 = vmatprep.subr.bf16.mxu0 0
  %2416 = vmatpush1.bf16.msra.mxu0 %v2373
  %2417 = vmatprep.subr.bf16.mxu0 0
  %2418 = vmatpush1.bf16.msra.mxu0 %v2374
  %2419 = vmatprep.subr.bf16.mxu0 0
  %2420 = vmatpush1.bf16.msra.mxu0 %v2375
  %2421 = vmatprep.subr.bf16.mxu0 0
  %2422 = vmatpush1.bf16.msra.mxu0 %v2376
  %2423 = vmatprep.subr.bf16.mxu0 0
  %2424 = vmatpush1.bf16.msra.mxu0 %v2377
  %2425 = vmatprep.subr.bf16.mxu0 0
  %2426 = vmatpush1.bf16.msra.mxu0 %v2378
  %2427 = vmatprep.subr.bf16.mxu0 0
  %2428 = vmatpush1.bf16.msra.mxu0 %v2379
  %2429 = vmatprep.subr.bf16.mxu0 0
  %2430 = vmatpush1.bf16.msra.mxu0 %v2380
  %2431 = vmatprep.subr.bf16.mxu0 0
  %2432 = vmatpush1.bf16.msra.mxu0 %v2381
  %2433 = vmatprep.subr.bf16.mxu0 0
  %2434 = vmatpush1.bf16.msra.mxu0 %v2382
  %2435 = vmatprep.subr.bf16.mxu0 0
  %2436 = vmatpush1.bf16.msra.mxu0 %v2383
  %2437 = vmatprep.subr.bf16.mxu0 0
  %2438 = vmatpush1.bf16.msra.mxu0 %v2384
  %2439 = vmatprep.mubr.bf16.mxu0 %v2404
  %2440 = vmatmul.mubr.bf16.gmra.mrb[0].mxu0 %v2403
  %v2441 = vpop.f32.mrb[0].mxu0
  %v2442 = vadd.f32 %v2390, %v2441
  %v2443 = vpop.f32.mrb[0].mxu0
  %v2444 = vpop.f32.mrb[0].mxu0
  %v2445 = vadd.f32 %v2395, %v2444
  %v2446 = vpop.f32.mrb[0].mxu0
  %2447 = vdwg.mxu0
  %vm2448 = vcmask 15360
  %v2449 = vsel %vm2448, %v2442, -inf
  %v2450 = vsel %vm2448, %v2445, -inf
  %v2451 = vmax.f32 %v2449, %v2450
  %v2452 = vrot.slane %v2451, 4
  %v2453 = vmax.f32 %v2451, %v2452
  %v2454 = vrot.slane %v2453, 2
  %v2455 = vmax.f32 %v2453, %v2454
  %v2456 = vrot.slane %v2455, 1
  %v2457 = vmax.f32 %v2455, %v2456
  %v2458 = vsub.f32 %v2442, %v2457
  %v2459 = vsub.f32 %v2445, %v2457
  %v2460 = vmul.f32 %v2458, 1.442695
  %v2461 = vpow.pop %v2460
  %v2462 = vmul.f32 %v2459, 1.442695
  %v2463 = vpow.pop %v2462
  %v2464 = vsel %vm2448, %v2461, 0.0
  %v2465 = vsel %vm2448, %v2463, 0.0
  %v2466 = vadd.f32 %v2464, %v2465
  %v2467 = vrot.slane %v2466, 4
  %v2468 = vadd.f32 %v2466, %v2467
  %v2469 = vrot.slane %v2468, 2
  %v2470 = vadd.f32 %v2468, %v2469
  %v2471 = vrot.slane %v2470, 1
  %v2472 = vadd.f32 %v2470, %v2471
  %v2473 = vrcp.pop %v2472
  %v2474 = vmul.f32 %v2461, %v2473
  %v2475 = vmul.f32 %v2463, %v2473
  %2476 = vst.msk [vmem:[%s11] sm:$0xff] %vm2448, %v2474
  %2477 = vst.msk [vmem:[%s11 + $0x8] sm:$0xff] %vm2448, %v2475
  // Predicated region
  $region46: #{ndnet_classification_forward.1} parent=0 // pred_check
    _
  $region47: #{ndnet_classification_forward.1} parent=0 // pred_check_branch
    %2479 = sbr.rel (0) target = $region49
  $region48: #{ndnet_classification_forward.1} parent=0 // pred_region
    _
  $region49: #{ndnet_classification_forward.1} parent=0 // pred_fallthru
    _
  // Predicated region
  $region50: #{ndnet_classification_forward.1} parent=0 // pred_check
    _
  $region51: #{ndnet_classification_forward.1} parent=0 // pred_check_branch
    %2481 = sbr.rel (0) target = $region53
  $region52: #{ndnet_classification_forward.1} parent=0 // pred_region
    _
  $region53: #{ndnet_classification_forward.1} parent=0 // pred_fallthru
    _

</llo_original>
